<compile_context>
chip_gen: v7x
topology: tpu7x:2x2x1
jax: 0.10.0
libtpu: 0.0.40
codegen_flags: <defaults>
</compile_context>

<pallas_src>
import jax
import jax.numpy as jnp
from jax import lax
from jax.experimental import pallas as pl
from jax.experimental.pallas import tpu as pltpu


def _interp_matrix(in_size: int, scale: int) -> jnp.ndarray:
    """Dense 1-D bilinear interpolation matrix matching PyTorch
    F.interpolate(mode='bilinear', align_corners=False)."""
    out_size = in_size * scale
    o = jnp.arange(out_size, dtype=jnp.float32)
    src = (o + 0.5) / float(scale) - 0.5
    src = jnp.maximum(src, 0.0)                       # PyTorch clamps src >= 0
    i0 = jnp.floor(src).astype(jnp.int32)
    lam = src - i0.astype(jnp.float32)
    i0 = jnp.clip(i0, 0, in_size - 1)
    i1 = jnp.clip(i0 + 1, 0, in_size - 1)
    m0 = jax.nn.one_hot(i0, in_size, dtype=jnp.float32) * (1.0 - lam)[:, None]
    m1 = jax.nn.one_hot(i1, in_size, dtype=jnp.float32) * lam[:, None]
    return m0 + m1                                    # (out_size, in_size)


def _bilinear_x4_kernel(x_ref, wwT_ref, wh_ref, o_ref, y1_ref):
    # x_ref:   (tile_n, H, W)     input dtype
    # wwT_ref: (W, Wo)            input dtype  (Ww^T)
    # wh_ref:  (Ho, H)            input dtype
    # o_ref:   (tile_n, Ho, Wo)   input dtype
    # y1_ref:  (tile_n, H, Wo)    VMEM scratch, input dtype
    tile_n, H, W = x_ref.shape
    Wo = o_ref.shape[2]

    # ---- width pass: one large 2-D MXU matmul over the whole n-tile ----
    x2d = x_ref[...].reshape(tile_n * H, W)
    y1 = jnp.dot(x2d, wwT_ref[...], preferred_element_type=jnp.float32)
    y1_ref[...] = y1.reshape(tile_n, H, Wo).astype(y1_ref.dtype)

    # ---- height pass: per-image 2-D MXU matmuls (unrolled short loop) ----
    # NOTE: output last dim is Wo; fully lane-dense when Wo % 128 == 0
    # (true for the real MambaUnet decoder sizes, e.g. Wo = 896).
    wh = wh_ref[...]

    def body(n, carry):
        o_ref[n] = jnp.dot(
            wh, y1_ref[n], preferred_element_type=jnp.float32
        ).astype(o_ref.dtype)
        return carry

    lax.fori_loop(0, tile_n, body, 0, unroll=True)


def _vmem_limit_bytes() -> int:
    """Generation-aware scoped-VMEM request (headroom on v7x's 64 MiB)."""
    try:
        phys = int(pltpu.get_tpu_info().vmem_capacity_bytes)
    except Exception:
        phys = 64 << 20        # conservative: v7x per-TensorCore VMEM
    # 60% of physical, never more than 64 MiB (safe on v5e/v6e/v7x alike).
    return min(int(phys * 0.6), 64 << 20)


def _pick_tile_n(N, H, W, Ho, Wo, itemsize, budget_bytes, max_tile=32):
    """Largest divisor of N whose (double-buffered) tiles fit the budget."""
    per_n = itemsize * (2 * H * W        # input tile, double buffered
                        + 2 * Ho * Wo    # output tile, double buffered
                        + H * Wo)        # y1 scratch, single buffer
    cap = max(1, int(budget_bytes // max(per_n, 1)))
    cap = min(cap, N, max_tile)
    for t in range(cap, 0, -1):
        if N % t == 0:
            return t
    return 1


def final_patch_expand_x4(x: jnp.ndarray, dim_scale: int = 4) -> jnp.ndarray:
    """x: (B, C, H, W) NCHW -> (B, C, dim_scale*H, dim_scale*W), same dtype."""
    B, C, H, W = x.shape
    Ho, Wo = H * dim_scale, W * dim_scale
    N = B * C
    dtype = x.dtype
    itemsize = jnp.dtype(dtype).itemsize

    # Interpolation matrices, fed to the MXU in the input dtype
    # (weights for scale=4 are multiples of 1/8 -> exact in bf16 too).
    wh = _interp_matrix(H, dim_scale).astype(dtype)       # (Ho, H)
    wwT = _interp_matrix(W, dim_scale).T.astype(dtype)    # (W, Wo)

    xr = x.reshape(N, H, W)                               # no dtype upcast

    vmem_limit = _vmem_limit_bytes()
    const_bytes = 2 * itemsize * (Ho * H + W * Wo)        # resident matrices
    tile_budget = int(vmem_limit * 0.7) - const_bytes
    tile_n = _pick_tile_n(N, H, W, Ho, Wo, itemsize, tile_budget)

    out = pl.pallas_call(
        _bilinear_x4_kernel,
        out_shape=jax.ShapeDtypeStruct((N, Ho, Wo), dtype),
        grid_spec=pltpu.PrefetchScalarGridSpec(
            num_scalar_prefetch=0,
            grid=(N // tile_n,),
            in_specs=[
                pl.BlockSpec((tile_n, H, W), lambda i: (i, 0, 0)),
                pl.BlockSpec((W, Wo), lambda i: (0, 0)),
                pl.BlockSpec((Ho, H), lambda i: (0, 0)),
            ],
            out_specs=pl.BlockSpec((tile_n, Ho, Wo), lambda i: (i, 0, 0)),
            scratch_shapes=[pltpu.VMEM((tile_n, H, Wo), dtype)],
        ),
        compiler_params=pltpu.CompilerParams(
            dimension_semantics=("parallel",),   # shards n-tiles across TCs (v7x)
            vmem_limit_bytes=vmem_limit,
        ),
    )(xr, wwT, wh)

    return out.reshape(B, C, Ho, Wo)


class FinalPatchExpandX4:
    """Pallas port of MambaUnet's FinalPatchExpand_X4.

    __init__ mirrors the PyTorch module's parameters (expand Linear, LayerNorm)
    but — exactly like the reference — forward() never uses them; the forward
    pass is only the bilinear x4 upsample."""

    def __init__(self, dim: int, dim_scale: int = 4):
        self.dim = dim
        self.dim_scale = dim_scale
        key = jax.random.PRNGKey(42)
        # nn.Linear(dim, 16*dim, bias=False) -> weight (16*dim, dim); unused.
        self.expand_weight = jax.random.normal(key, (16 * dim, dim), jnp.float32) * 0.02
        # nn.LayerNorm(dim); unused.
        self.norm_gamma = jnp.ones((dim,), jnp.float32)
        self.norm_beta = jnp.zeros((dim,), jnp.float32)

    def __call__(self, x):
        return final_patch_expand_x4(x, self.dim_scale)


if __name__ == "__main__":
    key = jax.random.PRNGKey(0)
    B, C, H, W = 2, 4, 16, 16
    x = jax.random.normal(key, (B, C, H, W), jnp.float32)

    module = FinalPatchExpandX4(dim=C, dim_scale=4)
    y = jax.block_until_ready(module(x))

    # Reference: same interpolation matrices applied in plain JAX/XLA.
    wh = _interp_matrix(H, 4)
    ww = _interp_matrix(W, 4)
    ref = jnp.einsum("ph,bchw,ow->bcpo", wh, x, ww)

    assert y.shape == (B, C, 4 * H, 4 * W), y.shape
    assert y.dtype == x.dtype, y.dtype
    max_err = float(jnp.max(jnp.abs(y - ref)))
    assert jnp.allclose(y, ref, atol=1e-4, rtol=1e-4), max_err

    print("KERNEL_OK")
</pallas_src>

<mosaic_0001>
module attributes {stable_mosaic.version = 11 : i64} {
  func.func @_bilinear_x4_kernel(%arg0: i32, %arg1: memref<8x16x16xf32, #tpu.memory_space<vmem>>, %arg2: memref<16x64xf32, #tpu.memory_space<vmem>>, %arg3: memref<64x16xf32, #tpu.memory_space<vmem>>, %arg4: memref<8x64x64xf32, #tpu.memory_space<vmem>>, %arg5: memref<8x16x64xf32, #tpu.memory_space<vmem>>) attributes {dimension_semantics = [#tpu.dimension_semantics<parallel>], iteration_bounds = array<i64: 1>, scalar_prefetch = 0 : i64, scratch_operands = 1 : i64, tpu.core_type = #tpu.core_type<tc>, window_params = [{transform_indices = @transform_0, window_bounds = array<i64: 8, 16, 16>}, {pipeline_mode = #tpu.pipeline_mode<synchronous>, transform_indices = @transform_1, window_bounds = array<i64: 16, 64>}, {pipeline_mode = #tpu.pipeline_mode<synchronous>, transform_indices = @transform_2, window_bounds = array<i64: 64, 16>}, {transform_indices = @transform_3, window_bounds = array<i64: 8, 64, 64>}]} {
    %c0 = arith.constant 0 : index
    %c0_0 = arith.constant 0 : index
    %c0_1 = arith.constant 0 : index
    %0 = vector.load %arg1[%c0, %c0_0, %c0_1] : memref<8x16x16xf32, #tpu.memory_space<vmem>>, vector<8x16x16xf32>
    %1 = vector.shape_cast %0 : vector<8x16x16xf32> to vector<128x16xf32>
    %c0_2 = arith.constant 0 : index
    %c0_3 = arith.constant 0 : index
    %2 = vector.load %arg2[%c0_2, %c0_3] : memref<16x64xf32, #tpu.memory_space<vmem>>, vector<16x64xf32>
    %cst = arith.constant dense<0.000000e+00> : vector<128x64xf32>
    %3 = tpu.matmul %1, %2, %cst {dimension_numbers = #tpu.dot_dimension_numbers<[1], [0], [0], [1], [0, 0, 1, 1], [], []>} : vector<128x16xf32>, vector<16x64xf32>, vector<128x64xf32> -> vector<128x64xf32>
    %4 = vector.shape_cast %3 : vector<128x64xf32> to vector<8x16x64xf32>
    %c0_4 = arith.constant 0 : index
    %c0_5 = arith.constant 0 : index
    %c0_6 = arith.constant 0 : index
    %5 = vector.load %arg5[%c0_4, %c0_5, %c0_6] : memref<8x16x64xf32, #tpu.memory_space<vmem>>, vector<8x16x64xf32>
    tpu.vector_store %arg5[%c0_4, %c0_5, %c0_6], %4 {strides = array<i32>} : memref<8x16x64xf32, #tpu.memory_space<vmem>>, vector<8x16x64xf32>,
    %c0_7 = arith.constant 0 : index
    %c0_8 = arith.constant 0 : index
    %6 = vector.load %arg3[%c0_7, %c0_8] : memref<64x16xf32, #tpu.memory_space<vmem>>, vector<64x16xf32>
    %c0_i32 = arith.constant 0 : i32
    %7 = arith.index_cast %c0_i32 : i32 to index
    %c0_9 = arith.constant 0 : index
    %c0_10 = arith.constant 0 : index
    %8 = vector.load %arg5[%7, %c0_9, %c0_10] : memref<8x16x64xf32, #tpu.memory_space<vmem>>, vector<1x16x64xf32>
    %9 = vector.shape_cast %8 : vector<1x16x64xf32> to vector<16x64xf32>
    %cst_11 = arith.constant dense<0.000000e+00> : vector<64x64xf32>
    %10 = tpu.matmul %6, %9, %cst_11 {dimension_numbers = #tpu.dot_dimension_numbers<[1], [0], [0], [1], [0, 0, 1, 1], [], []>} : vector<64x16xf32>, vector<16x64xf32>, vector<64x64xf32> -> vector<64x64xf32>
    %11 = arith.index_cast %c0_i32 : i32 to index
    %c0_12 = arith.constant 0 : index
    %c0_13 = arith.constant 0 : index
    %12 = vector.load %arg4[%11, %c0_12, %c0_13] : memref<8x64x64xf32, #tpu.memory_space<vmem>>, vector<1x64x64xf32>
    %13 = vector.shape_cast %12 : vector<1x64x64xf32> to vector<64x64xf32>
    %14 = vector.shape_cast %10 : vector<64x64xf32> to vector<1x64x64xf32>
    tpu.vector_store %arg4[%11, %c0_12, %c0_13], %14 {strides = array<i32>} : memref<8x64x64xf32, #tpu.memory_space<vmem>>, vector<1x64x64xf32>,
    %c1_i32 = arith.constant 1 : i32
    %15 = arith.index_cast %c1_i32 : i32 to index
    %c0_14 = arith.constant 0 : index
    %c0_15 = arith.constant 0 : index
    %16 = vector.load %arg5[%15, %c0_14, %c0_15] : memref<8x16x64xf32, #tpu.memory_space<vmem>>, vector<1x16x64xf32>
    %17 = vector.shape_cast %16 : vector<1x16x64xf32> to vector<16x64xf32>
    %cst_16 = arith.constant dense<0.000000e+00> : vector<64x64xf32>
    %18 = tpu.matmul %6, %17, %cst_16 {dimension_numbers = #tpu.dot_dimension_numbers<[1], [0], [0], [1], [0, 0, 1, 1], [], []>} : vector<64x16xf32>, vector<16x64xf32>, vector<64x64xf32> -> vector<64x64xf32>
    %19 = arith.index_cast %c1_i32 : i32 to index
    %c0_17 = arith.constant 0 : index
    %c0_18 = arith.constant 0 : index
    %20 = vector.load %arg4[%19, %c0_17, %c0_18] : memref<8x64x64xf32, #tpu.memory_space<vmem>>, vector<1x64x64xf32>
    %21 = vector.shape_cast %20 : vector<1x64x64xf32> to vector<64x64xf32>
    %22 = vector.shape_cast %18 : vector<64x64xf32> to vector<1x64x64xf32>
    tpu.vector_store %arg4[%19, %c0_17, %c0_18], %22 {strides = array<i32>} : memref<8x64x64xf32, #tpu.memory_space<vmem>>, vector<1x64x64xf32>,
    %c2_i32 = arith.constant 2 : i32
    %23 = arith.index_cast %c2_i32 : i32 to index
    %c0_19 = arith.constant 0 : index
    %c0_20 = arith.constant 0 : index
    %24 = vector.load %arg5[%23, %c0_19, %c0_20] : memref<8x16x64xf32, #tpu.memory_space<vmem>>, vector<1x16x64xf32>
    %25 = vector.shape_cast %24 : vector<1x16x64xf32> to vector<16x64xf32>
    %cst_21 = arith.constant dense<0.000000e+00> : vector<64x64xf32>
    %26 = tpu.matmul %6, %25, %cst_21 {dimension_numbers = #tpu.dot_dimension_numbers<[1], [0], [0], [1], [0, 0, 1, 1], [], []>} : vector<64x16xf32>, vector<16x64xf32>, vector<64x64xf32> -> vector<64x64xf32>
    %27 = arith.index_cast %c2_i32 : i32 to index
    %c0_22 = arith.constant 0 : index
    %c0_23 = arith.constant 0 : index
    %28 = vector.load %arg4[%27, %c0_22, %c0_23] : memref<8x64x64xf32, #tpu.memory_space<vmem>>, vector<1x64x64xf32>
    %29 = vector.shape_cast %28 : vector<1x64x64xf32> to vector<64x64xf32>
    %30 = vector.shape_cast %26 : vector<64x64xf32> to vector<1x64x64xf32>
    tpu.vector_store %arg4[%27, %c0_22, %c0_23], %30 {strides = array<i32>} : memref<8x64x64xf32, #tpu.memory_space<vmem>>, vector<1x64x64xf32>,
    %c3_i32 = arith.constant 3 : i32
    %31 = arith.index_cast %c3_i32 : i32 to index
    %c0_24 = arith.constant 0 : index
    %c0_25 = arith.constant 0 : index
    %32 = vector.load %arg5[%31, %c0_24, %c0_25] : memref<8x16x64xf32, #tpu.memory_space<vmem>>, vector<1x16x64xf32>
    %33 = vector.shape_cast %32 : vector<1x16x64xf32> to vector<16x64xf32>
    %cst_26 = arith.constant dense<0.000000e+00> : vector<64x64xf32>
    %34 = tpu.matmul %6, %33, %cst_26 {dimension_numbers = #tpu.dot_dimension_numbers<[1], [0], [0], [1], [0, 0, 1, 1], [], []>} : vector<64x16xf32>, vector<16x64xf32>, vector<64x64xf32> -> vector<64x64xf32>
    %35 = arith.index_cast %c3_i32 : i32 to index
    %c0_27 = arith.constant 0 : index
    %c0_28 = arith.constant 0 : index
    %36 = vector.load %arg4[%35, %c0_27, %c0_28] : memref<8x64x64xf32, #tpu.memory_space<vmem>>, vector<1x64x64xf32>
    %37 = vector.shape_cast %36 : vector<1x64x64xf32> to vector<64x64xf32>
    %38 = vector.shape_cast %34 : vector<64x64xf32> to vector<1x64x64xf32>
    tpu.vector_store %arg4[%35, %c0_27, %c0_28], %38 {strides = array<i32>} : memref<8x64x64xf32, #tpu.memory_space<vmem>>, vector<1x64x64xf32>,
    %c4_i32 = arith.constant 4 : i32
    %39 = arith.index_cast %c4_i32 : i32 to index
    %c0_29 = arith.constant 0 : index
    %c0_30 = arith.constant 0 : index
    %40 = vector.load %arg5[%39, %c0_29, %c0_30] : memref<8x16x64xf32, #tpu.memory_space<vmem>>, vector<1x16x64xf32>
    %41 = vector.shape_cast %40 : vector<1x16x64xf32> to vector<16x64xf32>
    %cst_31 = arith.constant dense<0.000000e+00> : vector<64x64xf32>
    %42 = tpu.matmul %6, %41, %cst_31 {dimension_numbers = #tpu.dot_dimension_numbers<[1], [0], [0], [1], [0, 0, 1, 1], [], []>} : vector<64x16xf32>, vector<16x64xf32>, vector<64x64xf32> -> vector<64x64xf32>
    %43 = arith.index_cast %c4_i32 : i32 to index
    %c0_32 = arith.constant 0 : index
    %c0_33 = arith.constant 0 : index
    %44 = vector.load %arg4[%43, %c0_32, %c0_33] : memref<8x64x64xf32, #tpu.memory_space<vmem>>, vector<1x64x64xf32>
    %45 = vector.shape_cast %44 : vector<1x64x64xf32> to vector<64x64xf32>
    %46 = vector.shape_cast %42 : vector<64x64xf32> to vector<1x64x64xf32>
    tpu.vector_store %arg4[%43, %c0_32, %c0_33], %46 {strides = array<i32>} : memref<8x64x64xf32, #tpu.memory_space<vmem>>, vector<1x64x64xf32>,
    %c5_i32 = arith.constant 5 : i32
    %47 = arith.index_cast %c5_i32 : i32 to index
    %c0_34 = arith.constant 0 : index
    %c0_35 = arith.constant 0 : index
    %48 = vector.load %arg5[%47, %c0_34, %c0_35] : memref<8x16x64xf32, #tpu.memory_space<vmem>>, vector<1x16x64xf32>
    %49 = vector.shape_cast %48 : vector<1x16x64xf32> to vector<16x64xf32>
    %cst_36 = arith.constant dense<0.000000e+00> : vector<64x64xf32>
    %50 = tpu.matmul %6, %49, %cst_36 {dimension_numbers = #tpu.dot_dimension_numbers<[1], [0], [0], [1], [0, 0, 1, 1], [], []>} : vector<64x16xf32>, vector<16x64xf32>, vector<64x64xf32> -> vector<64x64xf32>
    %51 = arith.index_cast %c5_i32 : i32 to index
    %c0_37 = arith.constant 0 : index
    %c0_38 = arith.constant 0 : index
    %52 = vector.load %arg4[%51, %c0_37, %c0_38] : memref<8x64x64xf32, #tpu.memory_space<vmem>>, vector<1x64x64xf32>
    %53 = vector.shape_cast %52 : vector<1x64x64xf32> to vector<64x64xf32>
    %54 = vector.shape_cast %50 : vector<64x64xf32> to vector<1x64x64xf32>
    tpu.vector_store %arg4[%51, %c0_37, %c0_38], %54 {strides = array<i32>} : memref<8x64x64xf32, #tpu.memory_space<vmem>>, vector<1x64x64xf32>,
    %c6_i32 = arith.constant 6 : i32
    %55 = arith.index_cast %c6_i32 : i32 to index
    %c0_39 = arith.constant 0 : index
    %c0_40 = arith.constant 0 : index
    %56 = vector.load %arg5[%55, %c0_39, %c0_40] : memref<8x16x64xf32, #tpu.memory_space<vmem>>, vector<1x16x64xf32>
    %57 = vector.shape_cast %56 : vector<1x16x64xf32> to vector<16x64xf32>
    %cst_41 = arith.constant dense<0.000000e+00> : vector<64x64xf32>
    %58 = tpu.matmul %6, %57, %cst_41 {dimension_numbers = #tpu.dot_dimension_numbers<[1], [0], [0], [1], [0, 0, 1, 1], [], []>} : vector<64x16xf32>, vector<16x64xf32>, vector<64x64xf32> -> vector<64x64xf32>
    %59 = arith.index_cast %c6_i32 : i32 to index
    %c0_42 = arith.constant 0 : index
    %c0_43 = arith.constant 0 : index
    %60 = vector.load %arg4[%59, %c0_42, %c0_43] : memref<8x64x64xf32, #tpu.memory_space<vmem>>, vector<1x64x64xf32>
    %61 = vector.shape_cast %60 : vector<1x64x64xf32> to vector<64x64xf32>
    %62 = vector.shape_cast %58 : vector<64x64xf32> to vector<1x64x64xf32>
    tpu.vector_store %arg4[%59, %c0_42, %c0_43], %62 {strides = array<i32>} : memref<8x64x64xf32, #tpu.memory_space<vmem>>, vector<1x64x64xf32>,
    %c7_i32 = arith.constant 7 : i32
    %63 = arith.index_cast %c7_i32 : i32 to index
    %c0_44 = arith.constant 0 : index
    %c0_45 = arith.constant 0 : index
    %64 = vector.load %arg5[%63, %c0_44, %c0_45] : memref<8x16x64xf32, #tpu.memory_space<vmem>>, vector<1x16x64xf32>
    %65 = vector.shape_cast %64 : vector<1x16x64xf32> to vector<16x64xf32>
    %cst_46 = arith.constant dense<0.000000e+00> : vector<64x64xf32>
    %66 = tpu.matmul %6, %65, %cst_46 {dimension_numbers = #tpu.dot_dimension_numbers<[1], [0], [0], [1], [0, 0, 1, 1], [], []>} : vector<64x16xf32>, vector<16x64xf32>, vector<64x64xf32> -> vector<64x64xf32>
    %67 = arith.index_cast %c7_i32 : i32 to index
    %c0_47 = arith.constant 0 : index
    %c0_48 = arith.constant 0 : index
    %68 = vector.load %arg4[%67, %c0_47, %c0_48] : memref<8x64x64xf32, #tpu.memory_space<vmem>>, vector<1x64x64xf32>
    %69 = vector.shape_cast %68 : vector<1x64x64xf32> to vector<64x64xf32>
    %70 = vector.shape_cast %66 : vector<64x64xf32> to vector<1x64x64xf32>
    tpu.vector_store %arg4[%67, %c0_47, %c0_48], %70 {strides = array<i32>} : memref<8x64x64xf32, #tpu.memory_space<vmem>>, vector<1x64x64xf32>,
    %c8_i32 = arith.constant 8 : i32
    return
  }
  func.func @transform_0(%arg0: i32) -> (i32, i32, i32) {
    %c0_i32 = arith.constant 0 : i32
    %c0_i32_0 = arith.constant 0 : i32
    %c0_i32_1 = arith.constant 0 : i32
    return %arg0, %c0_i32, %c0_i32_0 : i32, i32, i32
  }
  func.func @transform_1(%arg0: i32) -> (i32, i32) {
    %c0_i32 = arith.constant 0 : i32
    %c0_i32_0 = arith.constant 0 : i32
    %c0_i32_1 = arith.constant 0 : i32
    return %c0_i32, %c0_i32_0 : i32, i32
  }
  func.func @transform_2(%arg0: i32) -> (i32, i32) {
    %c0_i32 = arith.constant 0 : i32
    %c0_i32_0 = arith.constant 0 : i32
    %c0_i32_1 = arith.constant 0 : i32
    return %c0_i32, %c0_i32_0 : i32, i32
  }
  func.func @transform_3(%arg0: i32) -> (i32, i32, i32) {
    %c0_i32 = arith.constant 0 : i32
    %c0_i32_0 = arith.constant 0 : i32
    %c0_i32_1 = arith.constant 0 : i32
    return %arg0, %c0_i32, %c0_i32_0 : i32, i32, i32
  }
}

</mosaic_0001>

<llo_original>
// kernel: tpu_custom_call.1
$region0: #{tpu_custom_call.1}
  #allocation0 [shape = 'u32[]', space=smem, size = 0x4, offset = 0x4, fixed_abs, tag = 'smem constant byte address 0x4 - core index']
  #allocation1 [shape = 'u32[144,128]{1,0:T(1,128)}', space=vmem, size = 0x12000, scoped, tag = 'internal scratch']
  #allocation2 [shape = 'f32[8,16,64]{2,1,0:T(8,128)}', space=vmem, size = 0x10000, scoped, tag = 'scratch operand']
  %s0 = inlined_call_operand.hbm [shape: f32[8,16,16], index: 0, kind: input, shape index: {}]
  %s1 = inlined_call_operand.vmem [shape: f32[16,64], index: 1, kind: input, shape index: {}]
  %s2 = inlined_call_operand.vmem [shape: f32[64,16], index: 2, kind: input, shape index: {}]
  %s3 = inlined_call_operand.hbm [shape: f32[8,64,64], index: 3, kind: output, shape index: {}]
  %s4 = sld [smem:[#allocation0]]
  $region26: #{tpu_custom_call.1} parent=0
    _
  %s6 = ssub.s32 1, %s4
  %s7 = scalar_select 0, %s6, %s4
  $region1: #{tpu_custom_call.1} parent=0
    #allocation3 [shape = 'u8[65536]{0}', space=vmem, size = 0x10000, scoped, tag = 'input window, operand 0, single buffered']
    #allocation4 [shape = 's32[1]{0}', space=sflag, size = 0x4, scoped, tag = 'scoped memory for tpu_custom_call.1']
    #allocation5 [shape = 's32[1]{0}', space=sflag, size = 0x4, scoped, tag = 'scoped memory for tpu_custom_call.1']
    #allocation6 [shape = 'u8[262144]{0}', space=vmem, size = 0x40000, scoped, tag = 'output window, operand 0, single buffered']
    %8 = vsyncpa [#allocation4], 0
    %9 = vsyncpa [#allocation5], 0
    // Predicated region
    $region2: #{tpu_custom_call.1} parent=1 // pred_check
      _
    $region3: #{tpu_custom_call.1} parent=1 // pred_check_branch
      %11 = sbr.rel (0) target = $region5
    $region4: #{tpu_custom_call.1} parent=1 // pred_region
      %s13 = ssub.s32 2048, 2048
      %14 = vsyncadd [#allocation4], %s13
      %s15 = sshll.u32 [#allocation3], 4
      %s16 = int_to_ptr.vmem [resolvable:$true] %s15
      %21 = dma.hbm_to_vmem [thread:$0]  %s0, 2048, %s16, [#allocation4], 128, 128, 8
    $region5: #{tpu_custom_call.1} parent=1 // pred_fallthru
      _
    // Predicated region
    $region6: #{tpu_custom_call.1} parent=1 // pred_check
      _
    $region7: #{tpu_custom_call.1} parent=1 // pred_check_branch
      %23 = sbr.rel (0) target = $region9
    $region8: #{tpu_custom_call.1} parent=1 // pred_region
      _
    $region9: #{tpu_custom_call.1} parent=1 // pred_fallthru
      _
    // Predicated region
    $region10: #{tpu_custom_call.1} parent=1 // pred_check
      _
    $region11: #{tpu_custom_call.1} parent=1 // pred_check_branch
      %25 = sbr.rel (0) target = $region13
    $region12: #{tpu_custom_call.1} parent=1 // pred_region
      _
    $region13: #{tpu_custom_call.1} parent=1 // pred_fallthru
      _
    // Predicated region
    $region14: #{tpu_custom_call.1} parent=1 // pred_check
      _
    $region15: #{tpu_custom_call.1} parent=1 // pred_check_branch
      %27 = sbr.rel (0) target = $region17
    $region16: #{tpu_custom_call.1} parent=1 // pred_region
      %28 = dma.done [#allocation4], 2048
    $region17: #{tpu_custom_call.1} parent=1 // pred_fallthru
      _
    %v29 = vld [vmem:[#allocation3] sm:$0xff]
    %v30 = vld [vmem:[#allocation3 + $0x8] sm:$0xff]
    %v31 = vld [vmem:[#allocation3 + $0x10] sm:$0xff]
    %v32 = vld [vmem:[#allocation3 + $0x18] sm:$0xff]
    %v33 = vld [vmem:[#allocation3 + $0x20] sm:$0xff]
    %v34 = vld [vmem:[#allocation3 + $0x28] sm:$0xff]
    %v35 = vld [vmem:[#allocation3 + $0x30] sm:$0xff]
    %v36 = vld [vmem:[#allocation3 + $0x38] sm:$0xff]
    %v37 = vld [vmem:[#allocation3 + $0x40] sm:$0xff]
    %v38 = vld [vmem:[#allocation3 + $0x48] sm:$0xff]
    %v39 = vld [vmem:[#allocation3 + $0x50] sm:$0xff]
    %v40 = vld [vmem:[#allocation3 + $0x58] sm:$0xff]
    %v41 = vld [vmem:[#allocation3 + $0x60] sm:$0xff]
    %v42 = vld [vmem:[#allocation3 + $0x68] sm:$0xff]
    %v43 = vld [vmem:[#allocation3 + $0x70] sm:$0xff]
    %v44 = vld [vmem:[#allocation3 + $0x78] sm:$0xff]
    %v45 = vld [vmem:[%s1] sm:$0xff]
    %v46 = vld [vmem:[%s1 + $0x8] sm:$0xff]
    %vm47 = vcmask 130048
    %v49 = vsel %vm47, %v29, 0
    %v52 = vsel %vm47, %v30, 0
    %v55 = vsel %vm47, %v31, 0
    %v58 = vsel %vm47, %v32, 0
    %v61 = vsel %vm47, %v33, 0
    %v64 = vsel %vm47, %v34, 0
    %v67 = vsel %vm47, %v35, 0
    %v70 = vsel %vm47, %v36, 0
    %v73 = vsel %vm47, %v37, 0
    %v76 = vsel %vm47, %v38, 0
    %v79 = vsel %vm47, %v39, 0
    %v82 = vsel %vm47, %v40, 0
    %v85 = vsel %vm47, %v41, 0
    %v88 = vsel %vm47, %v42, 0
    %v91 = vsel %vm47, %v43, 0
    %v94 = vsel %vm47, %v44, 0
    %96 = vmatprep.subr.mxu0 0.0
    %97 = vmatpush1.msra.mxu0 %v45
    %98 = vmatprep.subr.mxu0 0.0
    %99 = vmatpush1.msra.mxu0 %v46
    %100 = vmatprep.subr.mxu0 0.0
    %101 = vmatpush1.msra.mxu0 0.0
    %102 = vmatprep.subr.mxu0 0.0
    %103 = vmatpush1.msra.mxu0 0.0
    %104 = vmatprep.subr.mxu0 0.0
    %105 = vmatpush1.msra.mxu0 0.0
    %106 = vmatprep.subr.mxu0 0.0
    %107 = vmatpush1.msra.mxu0 0.0
    %108 = vmatprep.subr.mxu0 0.0
    %109 = vmatpush1.msra.mxu0 0.0
    %110 = vmatprep.subr.mxu0 0.0
    %111 = vmatpush1.msra.mxu0 0.0
    %112 = vmatprep.subr.mxu0 0.0
    %113 = vmatpush1.msra.mxu0 0.0
    %114 = vmatprep.subr.mxu0 0.0
    %115 = vmatpush1.msra.mxu0 0.0
    %116 = vmatprep.subr.mxu0 0.0
    %117 = vmatpush1.msra.mxu0 0.0
    %118 = vmatprep.subr.mxu0 0.0
    %119 = vmatpush1.msra.mxu0 0.0
    %120 = vmatprep.subr.mxu0 0.0
    %121 = vmatpush1.msra.mxu0 0.0
    %122 = vmatprep.subr.mxu0 0.0
    %123 = vmatpush1.msra.mxu0 0.0
    %124 = vmatprep.subr.mxu0 0.0
    %125 = vmatpush1.msra.mxu0 0.0
    %126 = vmatprep.subr.mxu0 0.0
    %127 = vmatpush1.msra.mxu0 0.0
    %128 = vmatprep.subr.mxu0 0.0
    %129 = vmatpush1.msra.mxu0 0.0
    %130 = vmatprep.subr.mxu0 0.0
    %131 = vmatpush1.msra.mxu0 0.0
    %132 = vmatprep.subr.mxu0 0.0
    %133 = vmatpush1.msra.mxu0 0.0
    %134 = vmatprep.subr.mxu0 0.0
    %135 = vmatpush1.msra.mxu0 0.0
    %136 = vmatprep.subr.mxu0 0.0
    %137 = vmatpush1.msra.mxu0 0.0
    %138 = vmatprep.subr.mxu0 0.0
    %139 = vmatpush1.msra.mxu0 0.0
    %140 = vmatprep.subr.mxu0 0.0
    %141 = vmatpush1.msra.mxu0 0.0
    %142 = vmatprep.subr.mxu0 0.0
    %143 = vmatpush1.msra.mxu0 0.0
    %144 = vmatprep.subr.mxu0 0.0
    %145 = vmatpush1.msra.mxu0 0.0
    %146 = vmatprep.subr.mxu0 0.0
    %147 = vmatpush1.msra.mxu0 0.0
    %148 = vmatprep.subr.mxu0 0.0
    %149 = vmatpush1.msra.mxu0 0.0
    %150 = vmatprep.subr.mxu0 0.0
    %151 = vmatpush1.msra.mxu0 0.0
    %152 = vmatprep.subr.mxu0 0.0
    %153 = vmatpush1.msra.mxu0 0.0
    %154 = vmatprep.subr.mxu0 0.0
    %155 = vmatpush1.msra.mxu0 0.0
    %156 = vmatprep.subr.mxu0 0.0
    %157 = vmatpush1.msra.mxu0 0.0
    %158 = vmatprep.subr.mxu0 0.0
    %159 = vmatpush1.msra.mxu0 0.0
    %160 = vmatprep.mubr.f32.mxu0 0.0
    %161 = vmatmul.mubr.f32.gmra.mrb[0].mxu0 %v49
    %v162 = vpop.f32.mrb[0].mxu0
    %v163 = vadd.f32 0.0, %v162
    %v164 = vpop.f32.mrb[0].mxu0
    %165 = vmatprep.mubr.f32.mxu0 0.0
    %166 = vmatmul.mubr.f32.gmra.mrb[0].mxu0 %v52
    %v167 = vpop.f32.mrb[0].mxu0
    %v168 = vadd.f32 0.0, %v167
    %v169 = vpop.f32.mrb[0].mxu0
    %170 = vmatprep.mubr.f32.mxu0 0.0
    %171 = vmatmul.mubr.f32.gmra.mrb[0].mxu0 %v55
    %v172 = vpop.f32.mrb[0].mxu0
    %v173 = vadd.f32 0.0, %v172
    %v174 = vpop.f32.mrb[0].mxu0
    %175 = vmatprep.mubr.f32.mxu0 0.0
    %176 = vmatmul.mubr.f32.gmra.mrb[0].mxu0 %v58
    %v177 = vpop.f32.mrb[0].mxu0
    %v178 = vadd.f32 0.0, %v177
    %v179 = vpop.f32.mrb[0].mxu0
    %180 = vmatprep.mubr.f32.mxu0 0.0
    %181 = vmatmul.mubr.f32.gmra.mrb[0].mxu0 %v61
    %v182 = vpop.f32.mrb[0].mxu0
    %v183 = vadd.f32 0.0, %v182
    %v184 = vpop.f32.mrb[0].mxu0
    %185 = vmatprep.mubr.f32.mxu0 0.0
    %186 = vmatmul.mubr.f32.gmra.mrb[0].mxu0 %v64
    %v187 = vpop.f32.mrb[0].mxu0
    %v188 = vadd.f32 0.0, %v187
    %v189 = vpop.f32.mrb[0].mxu0
    %190 = vmatprep.mubr.f32.mxu0 0.0
    %191 = vmatmul.mubr.f32.gmra.mrb[0].mxu0 %v67
    %v192 = vpop.f32.mrb[0].mxu0
    %v193 = vadd.f32 0.0, %v192
    %v194 = vpop.f32.mrb[0].mxu0
    %195 = vmatprep.mubr.f32.mxu0 0.0
    %196 = vmatmul.mubr.f32.gmra.mrb[0].mxu0 %v70
    %v197 = vpop.f32.mrb[0].mxu0
    %v198 = vadd.f32 0.0, %v197
    %v199 = vpop.f32.mrb[0].mxu0
    %200 = vmatprep.mubr.f32.mxu0 0.0
    %201 = vmatmul.mubr.f32.gmra.mrb[0].mxu0 %v73
    %v202 = vpop.f32.mrb[0].mxu0
    %v203 = vadd.f32 0.0, %v202
    %v204 = vpop.f32.mrb[0].mxu0
    %205 = vmatprep.mubr.f32.mxu0 0.0
    %206 = vmatmul.mubr.f32.gmra.mrb[0].mxu0 %v76
    %v207 = vpop.f32.mrb[0].mxu0
    %v208 = vadd.f32 0.0, %v207
    %v209 = vpop.f32.mrb[0].mxu0
    %210 = vmatprep.mubr.f32.mxu0 0.0
    %211 = vmatmul.mubr.f32.gmra.mrb[0].mxu0 %v79
    %v212 = vpop.f32.mrb[0].mxu0
    %v213 = vadd.f32 0.0, %v212
    %v214 = vpop.f32.mrb[0].mxu0
    %215 = vmatprep.mubr.f32.mxu0 0.0
    %216 = vmatmul.mubr.f32.gmra.mrb[0].mxu0 %v82
    %v217 = vpop.f32.mrb[0].mxu0
    %v218 = vadd.f32 0.0, %v217
    %v219 = vpop.f32.mrb[0].mxu0
    %220 = vmatprep.mubr.f32.mxu0 0.0
    %221 = vmatmul.mubr.f32.gmra.mrb[0].mxu0 %v85
    %v222 = vpop.f32.mrb[0].mxu0
    %v223 = vadd.f32 0.0, %v222
    %v224 = vpop.f32.mrb[0].mxu0
    %225 = vmatprep.mubr.f32.mxu0 0.0
    %226 = vmatmul.mubr.f32.gmra.mrb[0].mxu0 %v88
    %v227 = vpop.f32.mrb[0].mxu0
    %v228 = vadd.f32 0.0, %v227
    %v229 = vpop.f32.mrb[0].mxu0
    %230 = vmatprep.mubr.f32.mxu0 0.0
    %231 = vmatmul.mubr.f32.gmra.mrb[0].mxu0 %v91
    %v232 = vpop.f32.mrb[0].mxu0
    %v233 = vadd.f32 0.0, %v232
    %v234 = vpop.f32.mrb[0].mxu0
    %235 = vmatprep.mubr.f32.mxu0 0.0
    %236 = vmatmul.mubr.f32.gmra.mrb[0].mxu0 %v94
    %v237 = vpop.f32.mrb[0].mxu0
    %v238 = vadd.f32 0.0, %v237
    %v239 = vpop.f32.mrb[0].mxu0
    %240 = vdwg.mxu0
    %vm241 = vcmask 523264
    %242 = vst.msk [vmem:[#allocation2] sm:$0xff] %vm241, %v163
    %243 = vst.msk [vmem:[#allocation2 + $0x8] sm:$0xff] %vm241, %v168
    %244 = vst.msk [vmem:[#allocation2 + $0x10] sm:$0xff] %vm241, %v173
    %245 = vst.msk [vmem:[#allocation2 + $0x18] sm:$0xff] %vm241, %v178
    %246 = vst.msk [vmem:[#allocation2 + $0x20] sm:$0xff] %vm241, %v183
    %247 = vst.msk [vmem:[#allocation2 + $0x28] sm:$0xff] %vm241, %v188
    %248 = vst.msk [vmem:[#allocation2 + $0x30] sm:$0xff] %vm241, %v193
    %249 = vst.msk [vmem:[#allocation2 + $0x38] sm:$0xff] %vm241, %v198
    %250 = vst.msk [vmem:[#allocation2 + $0x40] sm:$0xff] %vm241, %v203
    %251 = vst.msk [vmem:[#allocation2 + $0x48] sm:$0xff] %vm241, %v208
    %252 = vst.msk [vmem:[#allocation2 + $0x50] sm:$0xff] %vm241, %v213
    %253 = vst.msk [vmem:[#allocation2 + $0x58] sm:$0xff] %vm241, %v218
    %254 = vst.msk [vmem:[#allocation2 + $0x60] sm:$0xff] %vm241, %v223
    %255 = vst.msk [vmem:[#allocation2 + $0x68] sm:$0xff] %vm241, %v228
    %256 = vst.msk [vmem:[#allocation2 + $0x70] sm:$0xff] %vm241, %v233
    %257 = vst.msk [vmem:[#allocation2 + $0x78] sm:$0xff] %vm241, %v238
    %v258 = vld [vmem:[%s2] sm:$0xff]
    %v259 = vld [vmem:[%s2 + $0x8] sm:$0xff]
    %v260 = vld [vmem:[%s2 + $0x10] sm:$0xff]
    %v261 = vld [vmem:[%s2 + $0x18] sm:$0xff]
    %v262 = vld [vmem:[%s2 + $0x20] sm:$0xff]
    %v263 = vld [vmem:[%s2 + $0x28] sm:$0xff]
    %v264 = vld [vmem:[%s2 + $0x30] sm:$0xff]
    %v265 = vld [vmem:[%s2 + $0x38] sm:$0xff]
    %v266 = vld [vmem:[#allocation2] sm:$0xff]
    %v267 = vld [vmem:[#allocation2 + $0x8] sm:$0xff]
    %v269 = vsel %vm47, %v258, 0
    %v272 = vsel %vm47, %v259, 0
    %v275 = vsel %vm47, %v260, 0
    %v278 = vsel %vm47, %v261, 0
    %v281 = vsel %vm47, %v262, 0
    %v284 = vsel %vm47, %v263, 0
    %v287 = vsel %vm47, %v264, 0
    %v290 = vsel %vm47, %v265, 0
    %292 = vmatprep.subr.mxu0 0.0
    %293 = vmatpush1.msra.mxu0 %v266
    %294 = vmatprep.subr.mxu0 0.0
    %295 = vmatpush1.msra.mxu0 %v267
    %296 = vmatprep.subr.mxu0 0.0
    %297 = vmatpush1.msra.mxu0 0.0
    %298 = vmatprep.subr.mxu0 0.0
    %299 = vmatpush1.msra.mxu0 0.0
    %300 = vmatprep.subr.mxu0 0.0
    %301 = vmatpush1.msra.mxu0 0.0
    %302 = vmatprep.subr.mxu0 0.0
    %303 = vmatpush1.msra.mxu0 0.0
    %304 = vmatprep.subr.mxu0 0.0
    %305 = vmatpush1.msra.mxu0 0.0
    %306 = vmatprep.subr.mxu0 0.0
    %307 = vmatpush1.msra.mxu0 0.0
    %308 = vmatprep.subr.mxu0 0.0
    %309 = vmatpush1.msra.mxu0 0.0
    %310 = vmatprep.subr.mxu0 0.0
    %311 = vmatpush1.msra.mxu0 0.0
    %312 = vmatprep.subr.mxu0 0.0
    %313 = vmatpush1.msra.mxu0 0.0
    %314 = vmatprep.subr.mxu0 0.0
    %315 = vmatpush1.msra.mxu0 0.0
    %316 = vmatprep.subr.mxu0 0.0
    %317 = vmatpush1.msra.mxu0 0.0
    %318 = vmatprep.subr.mxu0 0.0
    %319 = vmatpush1.msra.mxu0 0.0
    %320 = vmatprep.subr.mxu0 0.0
    %321 = vmatpush1.msra.mxu0 0.0
    %322 = vmatprep.subr.mxu0 0.0
    %323 = vmatpush1.msra.mxu0 0.0
    %324 = vmatprep.subr.mxu0 0.0
    %325 = vmatpush1.msra.mxu0 0.0
    %326 = vmatprep.subr.mxu0 0.0
    %327 = vmatpush1.msra.mxu0 0.0
    %328 = vmatprep.subr.mxu0 0.0
    %329 = vmatpush1.msra.mxu0 0.0
    %330 = vmatprep.subr.mxu0 0.0
    %331 = vmatpush1.msra.mxu0 0.0
    %332 = vmatprep.subr.mxu0 0.0
    %333 = vmatpush1.msra.mxu0 0.0
    %334 = vmatprep.subr.mxu0 0.0
    %335 = vmatpush1.msra.mxu0 0.0
    %336 = vmatprep.subr.mxu0 0.0
    %337 = vmatpush1.msra.mxu0 0.0
    %338 = vmatprep.subr.mxu0 0.0
    %339 = vmatpush1.msra.mxu0 0.0
    %340 = vmatprep.subr.mxu0 0.0
    %341 = vmatpush1.msra.mxu0 0.0
    %342 = vmatprep.subr.mxu0 0.0
    %343 = vmatpush1.msra.mxu0 0.0
    %344 = vmatprep.subr.mxu0 0.0
    %345 = vmatpush1.msra.mxu0 0.0
    %346 = vmatprep.subr.mxu0 0.0
    %347 = vmatpush1.msra.mxu0 0.0
    %348 = vmatprep.subr.mxu0 0.0
    %349 = vmatpush1.msra.mxu0 0.0
    %350 = vmatprep.subr.mxu0 0.0
    %351 = vmatpush1.msra.mxu0 0.0
    %352 = vmatprep.subr.mxu0 0.0
    %353 = vmatpush1.msra.mxu0 0.0
    %354 = vmatprep.subr.mxu0 0.0
    %355 = vmatpush1.msra.mxu0 0.0
    %356 = vmatprep.mubr.f32.mxu0 0.0
    %357 = vmatmul.mubr.f32.gmra.mrb[0].mxu0 %v269
    %v358 = vpop.f32.mrb[0].mxu0
    %v359 = vadd.f32 0.0, %v358
    %v360 = vpop.f32.mrb[0].mxu0
    %361 = vmatprep.mubr.f32.mxu0 0.0
    %362 = vmatmul.mubr.f32.gmra.mrb[0].mxu0 %v272
    %v363 = vpop.f32.mrb[0].mxu0
    %v364 = vadd.f32 0.0, %v363
    %v365 = vpop.f32.mrb[0].mxu0
    %366 = vmatprep.mubr.f32.mxu0 0.0
    %367 = vmatmul.mubr.f32.gmra.mrb[0].mxu0 %v275
    %v368 = vpop.f32.mrb[0].mxu0
    %v369 = vadd.f32 0.0, %v368
    %v370 = vpop.f32.mrb[0].mxu0
    %371 = vmatprep.mubr.f32.mxu0 0.0
    %372 = vmatmul.mubr.f32.gmra.mrb[0].mxu0 %v278
    %v373 = vpop.f32.mrb[0].mxu0
    %v374 = vadd.f32 0.0, %v373
    %v375 = vpop.f32.mrb[0].mxu0
    %376 = vmatprep.mubr.f32.mxu0 0.0
    %377 = vmatmul.mubr.f32.gmra.mrb[0].mxu0 %v281
    %v378 = vpop.f32.mrb[0].mxu0
    %v379 = vadd.f32 0.0, %v378
    %v380 = vpop.f32.mrb[0].mxu0
    %381 = vmatprep.mubr.f32.mxu0 0.0
    %382 = vmatmul.mubr.f32.gmra.mrb[0].mxu0 %v284
    %v383 = vpop.f32.mrb[0].mxu0
    %v384 = vadd.f32 0.0, %v383
    %v385 = vpop.f32.mrb[0].mxu0
    %386 = vmatprep.mubr.f32.mxu0 0.0
    %387 = vmatmul.mubr.f32.gmra.mrb[0].mxu0 %v287
    %v388 = vpop.f32.mrb[0].mxu0
    %v389 = vadd.f32 0.0, %v388
    %v390 = vpop.f32.mrb[0].mxu0
    %391 = vmatprep.mubr.f32.mxu0 0.0
    %392 = vmatmul.mubr.f32.gmra.mrb[0].mxu0 %v290
    %v393 = vpop.f32.mrb[0].mxu0
    %v394 = vadd.f32 0.0, %v393
    %v395 = vpop.f32.mrb[0].mxu0
    %396 = vdwg.mxu0
    %397 = vst.msk [vmem:[#allocation6] sm:$0xff] %vm241, %v359
    %398 = vst.msk [vmem:[#allocation6 + $0x8] sm:$0xff] %vm241, %v364
    %399 = vst.msk [vmem:[#allocation6 + $0x10] sm:$0xff] %vm241, %v369
    %400 = vst.msk [vmem:[#allocation6 + $0x18] sm:$0xff] %vm241, %v374
    %401 = vst.msk [vmem:[#allocation6 + $0x20] sm:$0xff] %vm241, %v379
    %402 = vst.msk [vmem:[#allocation6 + $0x28] sm:$0xff] %vm241, %v384
    %403 = vst.msk [vmem:[#allocation6 + $0x30] sm:$0xff] %vm241, %v389
    %404 = vst.msk [vmem:[#allocation6 + $0x38] sm:$0xff] %vm241, %v394
    %s405 = scalar_lea.vmem [#allocation2], 16
    %v406 = vld [vmem:[%s405] sm:$0xff]
    %v407 = vld [vmem:[%s405 + $0x8] sm:$0xff]
    %408 = vmatprep.subr.mxu0 0.0
    %409 = vmatpush1.msra.mxu0 %v406
    %410 = vmatprep.subr.mxu0 0.0
    %411 = vmatpush1.msra.mxu0 %v407
    %412 = vmatprep.subr.mxu0 0.0
    %413 = vmatpush1.msra.mxu0 0.0
    %414 = vmatprep.subr.mxu0 0.0
    %415 = vmatpush1.msra.mxu0 0.0
    %416 = vmatprep.subr.mxu0 0.0
    %417 = vmatpush1.msra.mxu0 0.0
    %418 = vmatprep.subr.mxu0 0.0
    %419 = vmatpush1.msra.mxu0 0.0
    %420 = vmatprep.subr.mxu0 0.0
    %421 = vmatpush1.msra.mxu0 0.0
    %422 = vmatprep.subr.mxu0 0.0
    %423 = vmatpush1.msra.mxu0 0.0
    %424 = vmatprep.subr.mxu0 0.0
    %425 = vmatpush1.msra.mxu0 0.0
    %426 = vmatprep.subr.mxu0 0.0
    %427 = vmatpush1.msra.mxu0 0.0
    %428 = vmatprep.subr.mxu0 0.0
    %429 = vmatpush1.msra.mxu0 0.0
    %430 = vmatprep.subr.mxu0 0.0
    %431 = vmatpush1.msra.mxu0 0.0
    %432 = vmatprep.subr.mxu0 0.0
    %433 = vmatpush1.msra.mxu0 0.0
    %434 = vmatprep.subr.mxu0 0.0
    %435 = vmatpush1.msra.mxu0 0.0
    %436 = vmatprep.subr.mxu0 0.0
    %437 = vmatpush1.msra.mxu0 0.0
    %438 = vmatprep.subr.mxu0 0.0
    %439 = vmatpush1.msra.mxu0 0.0
    %440 = vmatprep.subr.mxu0 0.0
    %441 = vmatpush1.msra.mxu0 0.0
    %442 = vmatprep.subr.mxu0 0.0
    %443 = vmatpush1.msra.mxu0 0.0
    %444 = vmatprep.subr.mxu0 0.0
    %445 = vmatpush1.msra.mxu0 0.0
    %446 = vmatprep.subr.mxu0 0.0
    %447 = vmatpush1.msra.mxu0 0.0
    %448 = vmatprep.subr.mxu0 0.0
    %449 = vmatpush1.msra.mxu0 0.0
    %450 = vmatprep.subr.mxu0 0.0
    %451 = vmatpush1.msra.mxu0 0.0
    %452 = vmatprep.subr.mxu0 0.0
    %453 = vmatpush1.msra.mxu0 0.0
    %454 = vmatprep.subr.mxu0 0.0
    %455 = vmatpush1.msra.mxu0 0.0
    %456 = vmatprep.subr.mxu0 0.0
    %457 = vmatpush1.msra.mxu0 0.0
    %458 = vmatprep.subr.mxu0 0.0
    %459 = vmatpush1.msra.mxu0 0.0
    %460 = vmatprep.subr.mxu0 0.0
    %461 = vmatpush1.msra.mxu0 0.0
    %462 = vmatprep.subr.mxu0 0.0
    %463 = vmatpush1.msra.mxu0 0.0
    %464 = vmatprep.subr.mxu0 0.0
    %465 = vmatpush1.msra.mxu0 0.0
    %466 = vmatprep.subr.mxu0 0.0
    %467 = vmatpush1.msra.mxu0 0.0
    %468 = vmatprep.subr.mxu0 0.0
    %469 = vmatpush1.msra.mxu0 0.0
    %470 = vmatprep.subr.mxu0 0.0
    %471 = vmatpush1.msra.mxu0 0.0
    %472 = vmatprep.mubr.f32.mxu0 0.0
    %473 = vmatmul.mubr.f32.gmra.mrb[0].mxu0 %v269
    %v474 = vpop.f32.mrb[0].mxu0
    %v475 = vadd.f32 0.0, %v474
    %v476 = vpop.f32.mrb[0].mxu0
    %477 = vmatprep.mubr.f32.mxu0 0.0
    %478 = vmatmul.mubr.f32.gmra.mrb[0].mxu0 %v272
    %v479 = vpop.f32.mrb[0].mxu0
    %v480 = vadd.f32 0.0, %v479
    %v481 = vpop.f32.mrb[0].mxu0
    %482 = vmatprep.mubr.f32.mxu0 0.0
    %483 = vmatmul.mubr.f32.gmra.mrb[0].mxu0 %v275
    %v484 = vpop.f32.mrb[0].mxu0
    %v485 = vadd.f32 0.0, %v484
    %v486 = vpop.f32.mrb[0].mxu0
    %487 = vmatprep.mubr.f32.mxu0 0.0
    %488 = vmatmul.mubr.f32.gmra.mrb[0].mxu0 %v278
    %v489 = vpop.f32.mrb[0].mxu0
    %v490 = vadd.f32 0.0, %v489
    %v491 = vpop.f32.mrb[0].mxu0
    %492 = vmatprep.mubr.f32.mxu0 0.0
    %493 = vmatmul.mubr.f32.gmra.mrb[0].mxu0 %v281
    %v494 = vpop.f32.mrb[0].mxu0
    %v495 = vadd.f32 0.0, %v494
    %v496 = vpop.f32.mrb[0].mxu0
    %497 = vmatprep.mubr.f32.mxu0 0.0
    %498 = vmatmul.mubr.f32.gmra.mrb[0].mxu0 %v284
    %v499 = vpop.f32.mrb[0].mxu0
    %v500 = vadd.f32 0.0, %v499
    %v501 = vpop.f32.mrb[0].mxu0
    %502 = vmatprep.mubr.f32.mxu0 0.0
    %503 = vmatmul.mubr.f32.gmra.mrb[0].mxu0 %v287
    %v504 = vpop.f32.mrb[0].mxu0
    %v505 = vadd.f32 0.0, %v504
    %v506 = vpop.f32.mrb[0].mxu0
    %507 = vmatprep.mubr.f32.mxu0 0.0
    %508 = vmatmul.mubr.f32.gmra.mrb[0].mxu0 %v290
    %v509 = vpop.f32.mrb[0].mxu0
    %v510 = vadd.f32 0.0, %v509
    %v511 = vpop.f32.mrb[0].mxu0
    %512 = vdwg.mxu0
    %s513 = scalar_lea.vmem [#allocation6], 64
    %514 = vst.msk [vmem:[%s513] sm:$0xff] %vm241, %v475
    %515 = vst.msk [vmem:[%s513 + $0x8] sm:$0xff] %vm241, %v480
    %516 = vst.msk [vmem:[%s513 + $0x10] sm:$0xff] %vm241, %v485
    %517 = vst.msk [vmem:[%s513 + $0x18] sm:$0xff] %vm241, %v490
    %518 = vst.msk [vmem:[%s513 + $0x20] sm:$0xff] %vm241, %v495
    %519 = vst.msk [vmem:[%s513 + $0x28] sm:$0xff] %vm241, %v500
    %520 = vst.msk [vmem:[%s513 + $0x30] sm:$0xff] %vm241, %v505
    %521 = vst.msk [vmem:[%s513 + $0x38] sm:$0xff] %vm241, %v510
    %s522 = scalar_lea.vmem [#allocation2], 32
    %v523 = vld [vmem:[%s522] sm:$0xff]
    %v524 = vld [vmem:[%s522 + $0x8] sm:$0xff]
    %525 = vmatprep.subr.mxu0 0.0
    %526 = vmatpush1.msra.mxu0 %v523
    %527 = vmatprep.subr.mxu0 0.0
    %528 = vmatpush1.msra.mxu0 %v524
    %529 = vmatprep.subr.mxu0 0.0
    %530 = vmatpush1.msra.mxu0 0.0
    %531 = vmatprep.subr.mxu0 0.0
    %532 = vmatpush1.msra.mxu0 0.0
    %533 = vmatprep.subr.mxu0 0.0
    %534 = vmatpush1.msra.mxu0 0.0
    %535 = vmatprep.subr.mxu0 0.0
    %536 = vmatpush1.msra.mxu0 0.0
    %537 = vmatprep.subr.mxu0 0.0
    %538 = vmatpush1.msra.mxu0 0.0
    %539 = vmatprep.subr.mxu0 0.0
    %540 = vmatpush1.msra.mxu0 0.0
    %541 = vmatprep.subr.mxu0 0.0
    %542 = vmatpush1.msra.mxu0 0.0
    %543 = vmatprep.subr.mxu0 0.0
    %544 = vmatpush1.msra.mxu0 0.0
    %545 = vmatprep.subr.mxu0 0.0
    %546 = vmatpush1.msra.mxu0 0.0
    %547 = vmatprep.subr.mxu0 0.0
    %548 = vmatpush1.msra.mxu0 0.0
    %549 = vmatprep.subr.mxu0 0.0
    %550 = vmatpush1.msra.mxu0 0.0
    %551 = vmatprep.subr.mxu0 0.0
    %552 = vmatpush1.msra.mxu0 0.0
    %553 = vmatprep.subr.mxu0 0.0
    %554 = vmatpush1.msra.mxu0 0.0
    %555 = vmatprep.subr.mxu0 0.0
    %556 = vmatpush1.msra.mxu0 0.0
    %557 = vmatprep.subr.mxu0 0.0
    %558 = vmatpush1.msra.mxu0 0.0
    %559 = vmatprep.subr.mxu0 0.0
    %560 = vmatpush1.msra.mxu0 0.0
    %561 = vmatprep.subr.mxu0 0.0
    %562 = vmatpush1.msra.mxu0 0.0
    %563 = vmatprep.subr.mxu0 0.0
    %564 = vmatpush1.msra.mxu0 0.0
    %565 = vmatprep.subr.mxu0 0.0
    %566 = vmatpush1.msra.mxu0 0.0
    %567 = vmatprep.subr.mxu0 0.0
    %568 = vmatpush1.msra.mxu0 0.0
    %569 = vmatprep.subr.mxu0 0.0
    %570 = vmatpush1.msra.mxu0 0.0
    %571 = vmatprep.subr.mxu0 0.0
    %572 = vmatpush1.msra.mxu0 0.0
    %573 = vmatprep.subr.mxu0 0.0
    %574 = vmatpush1.msra.mxu0 0.0
    %575 = vmatprep.subr.mxu0 0.0
    %576 = vmatpush1.msra.mxu0 0.0
    %577 = vmatprep.subr.mxu0 0.0
    %578 = vmatpush1.msra.mxu0 0.0
    %579 = vmatprep.subr.mxu0 0.0
    %580 = vmatpush1.msra.mxu0 0.0
    %581 = vmatprep.subr.mxu0 0.0
    %582 = vmatpush1.msra.mxu0 0.0
    %583 = vmatprep.subr.mxu0 0.0
    %584 = vmatpush1.msra.mxu0 0.0
    %585 = vmatprep.subr.mxu0 0.0
    %586 = vmatpush1.msra.mxu0 0.0
    %587 = vmatprep.subr.mxu0 0.0
    %588 = vmatpush1.msra.mxu0 0.0
    %589 = vmatprep.mubr.f32.mxu0 0.0
    %590 = vmatmul.mubr.f32.gmra.mrb[0].mxu0 %v269
    %v591 = vpop.f32.mrb[0].mxu0
    %v592 = vadd.f32 0.0, %v591
    %v593 = vpop.f32.mrb[0].mxu0
    %594 = vmatprep.mubr.f32.mxu0 0.0
    %595 = vmatmul.mubr.f32.gmra.mrb[0].mxu0 %v272
    %v596 = vpop.f32.mrb[0].mxu0
    %v597 = vadd.f32 0.0, %v596
    %v598 = vpop.f32.mrb[0].mxu0
    %599 = vmatprep.mubr.f32.mxu0 0.0
    %600 = vmatmul.mubr.f32.gmra.mrb[0].mxu0 %v275
    %v601 = vpop.f32.mrb[0].mxu0
    %v602 = vadd.f32 0.0, %v601
    %v603 = vpop.f32.mrb[0].mxu0
    %604 = vmatprep.mubr.f32.mxu0 0.0
    %605 = vmatmul.mubr.f32.gmra.mrb[0].mxu0 %v278
    %v606 = vpop.f32.mrb[0].mxu0
    %v607 = vadd.f32 0.0, %v606
    %v608 = vpop.f32.mrb[0].mxu0
    %609 = vmatprep.mubr.f32.mxu0 0.0
    %610 = vmatmul.mubr.f32.gmra.mrb[0].mxu0 %v281
    %v611 = vpop.f32.mrb[0].mxu0
    %v612 = vadd.f32 0.0, %v611
    %v613 = vpop.f32.mrb[0].mxu0
    %614 = vmatprep.mubr.f32.mxu0 0.0
    %615 = vmatmul.mubr.f32.gmra.mrb[0].mxu0 %v284
    %v616 = vpop.f32.mrb[0].mxu0
    %v617 = vadd.f32 0.0, %v616
    %v618 = vpop.f32.mrb[0].mxu0
    %619 = vmatprep.mubr.f32.mxu0 0.0
    %620 = vmatmul.mubr.f32.gmra.mrb[0].mxu0 %v287
    %v621 = vpop.f32.mrb[0].mxu0
    %v622 = vadd.f32 0.0, %v621
    %v623 = vpop.f32.mrb[0].mxu0
    %624 = vmatprep.mubr.f32.mxu0 0.0
    %625 = vmatmul.mubr.f32.gmra.mrb[0].mxu0 %v290
    %v626 = vpop.f32.mrb[0].mxu0
    %v627 = vadd.f32 0.0, %v626
    %v628 = vpop.f32.mrb[0].mxu0
    %629 = vdwg.mxu0
    %s630 = scalar_lea.vmem [#allocation6], 128
    %631 = vst.msk [vmem:[%s630] sm:$0xff] %vm241, %v592
    %632 = vst.msk [vmem:[%s630 + $0x8] sm:$0xff] %vm241, %v597
    %633 = vst.msk [vmem:[%s630 + $0x10] sm:$0xff] %vm241, %v602
    %634 = vst.msk [vmem:[%s630 + $0x18] sm:$0xff] %vm241, %v607
    %635 = vst.msk [vmem:[%s630 + $0x20] sm:$0xff] %vm241, %v612
    %636 = vst.msk [vmem:[%s630 + $0x28] sm:$0xff] %vm241, %v617
    %637 = vst.msk [vmem:[%s630 + $0x30] sm:$0xff] %vm241, %v622
    %638 = vst.msk [vmem:[%s630 + $0x38] sm:$0xff] %vm241, %v627
    %s639 = scalar_lea.vmem [#allocation2], 48
    %v640 = vld [vmem:[%s639] sm:$0xff]
    %v641 = vld [vmem:[%s639 + $0x8] sm:$0xff]
    %642 = vmatprep.subr.mxu0 0.0
    %643 = vmatpush1.msra.mxu0 %v640
    %644 = vmatprep.subr.mxu0 0.0
    %645 = vmatpush1.msra.mxu0 %v641
    %646 = vmatprep.subr.mxu0 0.0
    %647 = vmatpush1.msra.mxu0 0.0
    %648 = vmatprep.subr.mxu0 0.0
    %649 = vmatpush1.msra.mxu0 0.0
    %650 = vmatprep.subr.mxu0 0.0
    %651 = vmatpush1.msra.mxu0 0.0
    %652 = vmatprep.subr.mxu0 0.0
    %653 = vmatpush1.msra.mxu0 0.0
    %654 = vmatprep.subr.mxu0 0.0
    %655 = vmatpush1.msra.mxu0 0.0
    %656 = vmatprep.subr.mxu0 0.0
    %657 = vmatpush1.msra.mxu0 0.0
    %658 = vmatprep.subr.mxu0 0.0
    %659 = vmatpush1.msra.mxu0 0.0
    %660 = vmatprep.subr.mxu0 0.0
    %661 = vmatpush1.msra.mxu0 0.0
    %662 = vmatprep.subr.mxu0 0.0
    %663 = vmatpush1.msra.mxu0 0.0
    %664 = vmatprep.subr.mxu0 0.0
    %665 = vmatpush1.msra.mxu0 0.0
    %666 = vmatprep.subr.mxu0 0.0
    %667 = vmatpush1.msra.mxu0 0.0
    %668 = vmatprep.subr.mxu0 0.0
    %669 = vmatpush1.msra.mxu0 0.0
    %670 = vmatprep.subr.mxu0 0.0
    %671 = vmatpush1.msra.mxu0 0.0
    %672 = vmatprep.subr.mxu0 0.0
    %673 = vmatpush1.msra.mxu0 0.0
    %674 = vmatprep.subr.mxu0 0.0
    %675 = vmatpush1.msra.mxu0 0.0
    %676 = vmatprep.subr.mxu0 0.0
    %677 = vmatpush1.msra.mxu0 0.0
    %678 = vmatprep.subr.mxu0 0.0
    %679 = vmatpush1.msra.mxu0 0.0
    %680 = vmatprep.subr.mxu0 0.0
    %681 = vmatpush1.msra.mxu0 0.0
    %682 = vmatprep.subr.mxu0 0.0
    %683 = vmatpush1.msra.mxu0 0.0
    %684 = vmatprep.subr.mxu0 0.0
    %685 = vmatpush1.msra.mxu0 0.0
    %686 = vmatprep.subr.mxu0 0.0
    %687 = vmatpush1.msra.mxu0 0.0
    %688 = vmatprep.subr.mxu0 0.0
    %689 = vmatpush1.msra.mxu0 0.0
    %690 = vmatprep.subr.mxu0 0.0
    %691 = vmatpush1.msra.mxu0 0.0
    %692 = vmatprep.subr.mxu0 0.0
    %693 = vmatpush1.msra.mxu0 0.0
    %694 = vmatprep.subr.mxu0 0.0
    %695 = vmatpush1.msra.mxu0 0.0
    %696 = vmatprep.subr.mxu0 0.0
    %697 = vmatpush1.msra.mxu0 0.0
    %698 = vmatprep.subr.mxu0 0.0
    %699 = vmatpush1.msra.mxu0 0.0
    %700 = vmatprep.subr.mxu0 0.0
    %701 = vmatpush1.msra.mxu0 0.0
    %702 = vmatprep.subr.mxu0 0.0
    %703 = vmatpush1.msra.mxu0 0.0
    %704 = vmatprep.subr.mxu0 0.0
    %705 = vmatpush1.msra.mxu0 0.0
    %706 = vmatprep.mubr.f32.mxu0 0.0
    %707 = vmatmul.mubr.f32.gmra.mrb[0].mxu0 %v269
    %v708 = vpop.f32.mrb[0].mxu0
    %v709 = vadd.f32 0.0, %v708
    %v710 = vpop.f32.mrb[0].mxu0
    %711 = vmatprep.mubr.f32.mxu0 0.0
    %712 = vmatmul.mubr.f32.gmra.mrb[0].mxu0 %v272
    %v713 = vpop.f32.mrb[0].mxu0
    %v714 = vadd.f32 0.0, %v713
    %v715 = vpop.f32.mrb[0].mxu0
    %716 = vmatprep.mubr.f32.mxu0 0.0
    %717 = vmatmul.mubr.f32.gmra.mrb[0].mxu0 %v275
    %v718 = vpop.f32.mrb[0].mxu0
    %v719 = vadd.f32 0.0, %v718
    %v720 = vpop.f32.mrb[0].mxu0
    %721 = vmatprep.mubr.f32.mxu0 0.0
    %722 = vmatmul.mubr.f32.gmra.mrb[0].mxu0 %v278
    %v723 = vpop.f32.mrb[0].mxu0
    %v724 = vadd.f32 0.0, %v723
    %v725 = vpop.f32.mrb[0].mxu0
    %726 = vmatprep.mubr.f32.mxu0 0.0
    %727 = vmatmul.mubr.f32.gmra.mrb[0].mxu0 %v281
    %v728 = vpop.f32.mrb[0].mxu0
    %v729 = vadd.f32 0.0, %v728
    %v730 = vpop.f32.mrb[0].mxu0
    %731 = vmatprep.mubr.f32.mxu0 0.0
    %732 = vmatmul.mubr.f32.gmra.mrb[0].mxu0 %v284
    %v733 = vpop.f32.mrb[0].mxu0
    %v734 = vadd.f32 0.0, %v733
    %v735 = vpop.f32.mrb[0].mxu0
    %736 = vmatprep.mubr.f32.mxu0 0.0
    %737 = vmatmul.mubr.f32.gmra.mrb[0].mxu0 %v287
    %v738 = vpop.f32.mrb[0].mxu0
    %v739 = vadd.f32 0.0, %v738
    %v740 = vpop.f32.mrb[0].mxu0
    %741 = vmatprep.mubr.f32.mxu0 0.0
    %742 = vmatmul.mubr.f32.gmra.mrb[0].mxu0 %v290
    %v743 = vpop.f32.mrb[0].mxu0
    %v744 = vadd.f32 0.0, %v743
    %v745 = vpop.f32.mrb[0].mxu0
    %746 = vdwg.mxu0
    %s747 = scalar_lea.vmem [#allocation6], 192
    %748 = vst.msk [vmem:[%s747] sm:$0xff] %vm241, %v709
    %749 = vst.msk [vmem:[%s747 + $0x8] sm:$0xff] %vm241, %v714
    %750 = vst.msk [vmem:[%s747 + $0x10] sm:$0xff] %vm241, %v719
    %751 = vst.msk [vmem:[%s747 + $0x18] sm:$0xff] %vm241, %v724
    %752 = vst.msk [vmem:[%s747 + $0x20] sm:$0xff] %vm241, %v729
    %753 = vst.msk [vmem:[%s747 + $0x28] sm:$0xff] %vm241, %v734
    %754 = vst.msk [vmem:[%s747 + $0x30] sm:$0xff] %vm241, %v739
    %755 = vst.msk [vmem:[%s747 + $0x38] sm:$0xff] %vm241, %v744
    %s756 = scalar_lea.vmem [#allocation2], 64
    %v757 = vld [vmem:[%s756] sm:$0xff]
    %v758 = vld [vmem:[%s756 + $0x8] sm:$0xff]
    %759 = vmatprep.subr.mxu0 0.0
    %760 = vmatpush1.msra.mxu0 %v757
    %761 = vmatprep.subr.mxu0 0.0
    %762 = vmatpush1.msra.mxu0 %v758
    %763 = vmatprep.subr.mxu0 0.0
    %764 = vmatpush1.msra.mxu0 0.0
    %765 = vmatprep.subr.mxu0 0.0
    %766 = vmatpush1.msra.mxu0 0.0
    %767 = vmatprep.subr.mxu0 0.0
    %768 = vmatpush1.msra.mxu0 0.0
    %769 = vmatprep.subr.mxu0 0.0
    %770 = vmatpush1.msra.mxu0 0.0
    %771 = vmatprep.subr.mxu0 0.0
    %772 = vmatpush1.msra.mxu0 0.0
    %773 = vmatprep.subr.mxu0 0.0
    %774 = vmatpush1.msra.mxu0 0.0
    %775 = vmatprep.subr.mxu0 0.0
    %776 = vmatpush1.msra.mxu0 0.0
    %777 = vmatprep.subr.mxu0 0.0
    %778 = vmatpush1.msra.mxu0 0.0
    %779 = vmatprep.subr.mxu0 0.0
    %780 = vmatpush1.msra.mxu0 0.0
    %781 = vmatprep.subr.mxu0 0.0
    %782 = vmatpush1.msra.mxu0 0.0
    %783 = vmatprep.subr.mxu0 0.0
    %784 = vmatpush1.msra.mxu0 0.0
    %785 = vmatprep.subr.mxu0 0.0
    %786 = vmatpush1.msra.mxu0 0.0
    %787 = vmatprep.subr.mxu0 0.0
    %788 = vmatpush1.msra.mxu0 0.0
    %789 = vmatprep.subr.mxu0 0.0
    %790 = vmatpush1.msra.mxu0 0.0
    %791 = vmatprep.subr.mxu0 0.0
    %792 = vmatpush1.msra.mxu0 0.0
    %793 = vmatprep.subr.mxu0 0.0
    %794 = vmatpush1.msra.mxu0 0.0
    %795 = vmatprep.subr.mxu0 0.0
    %796 = vmatpush1.msra.mxu0 0.0
    %797 = vmatprep.subr.mxu0 0.0
    %798 = vmatpush1.msra.mxu0 0.0
    %799 = vmatprep.subr.mxu0 0.0
    %800 = vmatpush1.msra.mxu0 0.0
    %801 = vmatprep.subr.mxu0 0.0
    %802 = vmatpush1.msra.mxu0 0.0
    %803 = vmatprep.subr.mxu0 0.0
    %804 = vmatpush1.msra.mxu0 0.0
    %805 = vmatprep.subr.mxu0 0.0
    %806 = vmatpush1.msra.mxu0 0.0
    %807 = vmatprep.subr.mxu0 0.0
    %808 = vmatpush1.msra.mxu0 0.0
    %809 = vmatprep.subr.mxu0 0.0
    %810 = vmatpush1.msra.mxu0 0.0
    %811 = vmatprep.subr.mxu0 0.0
    %812 = vmatpush1.msra.mxu0 0.0
    %813 = vmatprep.subr.mxu0 0.0
    %814 = vmatpush1.msra.mxu0 0.0
    %815 = vmatprep.subr.mxu0 0.0
    %816 = vmatpush1.msra.mxu0 0.0
    %817 = vmatprep.subr.mxu0 0.0
    %818 = vmatpush1.msra.mxu0 0.0
    %819 = vmatprep.subr.mxu0 0.0
    %820 = vmatpush1.msra.mxu0 0.0
    %821 = vmatprep.subr.mxu0 0.0
    %822 = vmatpush1.msra.mxu0 0.0
    %823 = vmatprep.mubr.f32.mxu0 0.0
    %824 = vmatmul.mubr.f32.gmra.mrb[0].mxu0 %v269
    %v825 = vpop.f32.mrb[0].mxu0
    %v826 = vadd.f32 0.0, %v825
    %v827 = vpop.f32.mrb[0].mxu0
    %828 = vmatprep.mubr.f32.mxu0 0.0
    %829 = vmatmul.mubr.f32.gmra.mrb[0].mxu0 %v272
    %v830 = vpop.f32.mrb[0].mxu0
    %v831 = vadd.f32 0.0, %v830
    %v832 = vpop.f32.mrb[0].mxu0
    %833 = vmatprep.mubr.f32.mxu0 0.0
    %834 = vmatmul.mubr.f32.gmra.mrb[0].mxu0 %v275
    %v835 = vpop.f32.mrb[0].mxu0
    %v836 = vadd.f32 0.0, %v835
    %v837 = vpop.f32.mrb[0].mxu0
    %838 = vmatprep.mubr.f32.mxu0 0.0
    %839 = vmatmul.mubr.f32.gmra.mrb[0].mxu0 %v278
    %v840 = vpop.f32.mrb[0].mxu0
    %v841 = vadd.f32 0.0, %v840
    %v842 = vpop.f32.mrb[0].mxu0
    %843 = vmatprep.mubr.f32.mxu0 0.0
    %844 = vmatmul.mubr.f32.gmra.mrb[0].mxu0 %v281
    %v845 = vpop.f32.mrb[0].mxu0
    %v846 = vadd.f32 0.0, %v845
    %v847 = vpop.f32.mrb[0].mxu0
    %848 = vmatprep.mubr.f32.mxu0 0.0
    %849 = vmatmul.mubr.f32.gmra.mrb[0].mxu0 %v284
    %v850 = vpop.f32.mrb[0].mxu0
    %v851 = vadd.f32 0.0, %v850
    %v852 = vpop.f32.mrb[0].mxu0
    %853 = vmatprep.mubr.f32.mxu0 0.0
    %854 = vmatmul.mubr.f32.gmra.mrb[0].mxu0 %v287
    %v855 = vpop.f32.mrb[0].mxu0
    %v856 = vadd.f32 0.0, %v855
    %v857 = vpop.f32.mrb[0].mxu0
    %858 = vmatprep.mubr.f32.mxu0 0.0
    %859 = vmatmul.mubr.f32.gmra.mrb[0].mxu0 %v290
    %v860 = vpop.f32.mrb[0].mxu0
    %v861 = vadd.f32 0.0, %v860
    %v862 = vpop.f32.mrb[0].mxu0
    %863 = vdwg.mxu0
    %s864 = scalar_lea.vmem [#allocation6], 256
    %865 = vst.msk [vmem:[%s864] sm:$0xff] %vm241, %v826
    %866 = vst.msk [vmem:[%s864 + $0x8] sm:$0xff] %vm241, %v831
    %867 = vst.msk [vmem:[%s864 + $0x10] sm:$0xff] %vm241, %v836
    %868 = vst.msk [vmem:[%s864 + $0x18] sm:$0xff] %vm241, %v841
    %869 = vst.msk [vmem:[%s864 + $0x20] sm:$0xff] %vm241, %v846
    %870 = vst.msk [vmem:[%s864 + $0x28] sm:$0xff] %vm241, %v851
    %871 = vst.msk [vmem:[%s864 + $0x30] sm:$0xff] %vm241, %v856
    %872 = vst.msk [vmem:[%s864 + $0x38] sm:$0xff] %vm241, %v861
    %s873 = scalar_lea.vmem [#allocation2], 80
    %v874 = vld [vmem:[%s873] sm:$0xff]
    %v875 = vld [vmem:[%s873 + $0x8] sm:$0xff]
    %876 = vmatprep.subr.mxu0 0.0
    %877 = vmatpush1.msra.mxu0 %v874
    %878 = vmatprep.subr.mxu0 0.0
    %879 = vmatpush1.msra.mxu0 %v875
    %880 = vmatprep.subr.mxu0 0.0
    %881 = vmatpush1.msra.mxu0 0.0
    %882 = vmatprep.subr.mxu0 0.0
    %883 = vmatpush1.msra.mxu0 0.0
    %884 = vmatprep.subr.mxu0 0.0
    %885 = vmatpush1.msra.mxu0 0.0
    %886 = vmatprep.subr.mxu0 0.0
    %887 = vmatpush1.msra.mxu0 0.0
    %888 = vmatprep.subr.mxu0 0.0
    %889 = vmatpush1.msra.mxu0 0.0
    %890 = vmatprep.subr.mxu0 0.0
    %891 = vmatpush1.msra.mxu0 0.0
    %892 = vmatprep.subr.mxu0 0.0
    %893 = vmatpush1.msra.mxu0 0.0
    %894 = vmatprep.subr.mxu0 0.0
    %895 = vmatpush1.msra.mxu0 0.0
    %896 = vmatprep.subr.mxu0 0.0
    %897 = vmatpush1.msra.mxu0 0.0
    %898 = vmatprep.subr.mxu0 0.0
    %899 = vmatpush1.msra.mxu0 0.0
    %900 = vmatprep.subr.mxu0 0.0
    %901 = vmatpush1.msra.mxu0 0.0
    %902 = vmatprep.subr.mxu0 0.0
    %903 = vmatpush1.msra.mxu0 0.0
    %904 = vmatprep.subr.mxu0 0.0
    %905 = vmatpush1.msra.mxu0 0.0
    %906 = vmatprep.subr.mxu0 0.0
    %907 = vmatpush1.msra.mxu0 0.0
    %908 = vmatprep.subr.mxu0 0.0
    %909 = vmatpush1.msra.mxu0 0.0
    %910 = vmatprep.subr.mxu0 0.0
    %911 = vmatpush1.msra.mxu0 0.0
    %912 = vmatprep.subr.mxu0 0.0
    %913 = vmatpush1.msra.mxu0 0.0
    %914 = vmatprep.subr.mxu0 0.0
    %915 = vmatpush1.msra.mxu0 0.0
    %916 = vmatprep.subr.mxu0 0.0
    %917 = vmatpush1.msra.mxu0 0.0
    %918 = vmatprep.subr.mxu0 0.0
    %919 = vmatpush1.msra.mxu0 0.0
    %920 = vmatprep.subr.mxu0 0.0
    %921 = vmatpush1.msra.mxu0 0.0
    %922 = vmatprep.subr.mxu0 0.0
    %923 = vmatpush1.msra.mxu0 0.0
    %924 = vmatprep.subr.mxu0 0.0
    %925 = vmatpush1.msra.mxu0 0.0
    %926 = vmatprep.subr.mxu0 0.0
    %927 = vmatpush1.msra.mxu0 0.0
    %928 = vmatprep.subr.mxu0 0.0
    %929 = vmatpush1.msra.mxu0 0.0
    %930 = vmatprep.subr.mxu0 0.0
    %931 = vmatpush1.msra.mxu0 0.0
    %932 = vmatprep.subr.mxu0 0.0
    %933 = vmatpush1.msra.mxu0 0.0
    %934 = vmatprep.subr.mxu0 0.0
    %935 = vmatpush1.msra.mxu0 0.0
    %936 = vmatprep.subr.mxu0 0.0
    %937 = vmatpush1.msra.mxu0 0.0
    %938 = vmatprep.subr.mxu0 0.0
    %939 = vmatpush1.msra.mxu0 0.0
    %940 = vmatprep.mubr.f32.mxu0 0.0
    %941 = vmatmul.mubr.f32.gmra.mrb[0].mxu0 %v269
    %v942 = vpop.f32.mrb[0].mxu0
    %v943 = vadd.f32 0.0, %v942
    %v944 = vpop.f32.mrb[0].mxu0
    %945 = vmatprep.mubr.f32.mxu0 0.0
    %946 = vmatmul.mubr.f32.gmra.mrb[0].mxu0 %v272
    %v947 = vpop.f32.mrb[0].mxu0
    %v948 = vadd.f32 0.0, %v947
    %v949 = vpop.f32.mrb[0].mxu0
    %950 = vmatprep.mubr.f32.mxu0 0.0
    %951 = vmatmul.mubr.f32.gmra.mrb[0].mxu0 %v275
    %v952 = vpop.f32.mrb[0].mxu0
    %v953 = vadd.f32 0.0, %v952
    %v954 = vpop.f32.mrb[0].mxu0
    %955 = vmatprep.mubr.f32.mxu0 0.0
    %956 = vmatmul.mubr.f32.gmra.mrb[0].mxu0 %v278
    %v957 = vpop.f32.mrb[0].mxu0
    %v958 = vadd.f32 0.0, %v957
    %v959 = vpop.f32.mrb[0].mxu0
    %960 = vmatprep.mubr.f32.mxu0 0.0
    %961 = vmatmul.mubr.f32.gmra.mrb[0].mxu0 %v281
    %v962 = vpop.f32.mrb[0].mxu0
    %v963 = vadd.f32 0.0, %v962
    %v964 = vpop.f32.mrb[0].mxu0
    %965 = vmatprep.mubr.f32.mxu0 0.0
    %966 = vmatmul.mubr.f32.gmra.mrb[0].mxu0 %v284
    %v967 = vpop.f32.mrb[0].mxu0
    %v968 = vadd.f32 0.0, %v967
    %v969 = vpop.f32.mrb[0].mxu0
    %970 = vmatprep.mubr.f32.mxu0 0.0
    %971 = vmatmul.mubr.f32.gmra.mrb[0].mxu0 %v287
    %v972 = vpop.f32.mrb[0].mxu0
    %v973 = vadd.f32 0.0, %v972
    %v974 = vpop.f32.mrb[0].mxu0
    %975 = vmatprep.mubr.f32.mxu0 0.0
    %976 = vmatmul.mubr.f32.gmra.mrb[0].mxu0 %v290
    %v977 = vpop.f32.mrb[0].mxu0
    %v978 = vadd.f32 0.0, %v977
    %v979 = vpop.f32.mrb[0].mxu0
    %980 = vdwg.mxu0
    %s981 = scalar_lea.vmem [#allocation6], 320
    %982 = vst.msk [vmem:[%s981] sm:$0xff] %vm241, %v943
    %983 = vst.msk [vmem:[%s981 + $0x8] sm:$0xff] %vm241, %v948
    %984 = vst.msk [vmem:[%s981 + $0x10] sm:$0xff] %vm241, %v953
    %985 = vst.msk [vmem:[%s981 + $0x18] sm:$0xff] %vm241, %v958
    %986 = vst.msk [vmem:[%s981 + $0x20] sm:$0xff] %vm241, %v963
    %987 = vst.msk [vmem:[%s981 + $0x28] sm:$0xff] %vm241, %v968
    %988 = vst.msk [vmem:[%s981 + $0x30] sm:$0xff] %vm241, %v973
    %989 = vst.msk [vmem:[%s981 + $0x38] sm:$0xff] %vm241, %v978
    %s990 = scalar_lea.vmem [#allocation2], 96
    %v991 = vld [vmem:[%s990] sm:$0xff]
    %v992 = vld [vmem:[%s990 + $0x8] sm:$0xff]
    %993 = vmatprep.subr.mxu0 0.0
    %994 = vmatpush1.msra.mxu0 %v991
    %995 = vmatprep.subr.mxu0 0.0
    %996 = vmatpush1.msra.mxu0 %v992
    %997 = vmatprep.subr.mxu0 0.0
    %998 = vmatpush1.msra.mxu0 0.0
    %999 = vmatprep.subr.mxu0 0.0
    %1000 = vmatpush1.msra.mxu0 0.0
    %1001 = vmatprep.subr.mxu0 0.0
    %1002 = vmatpush1.msra.mxu0 0.0
    %1003 = vmatprep.subr.mxu0 0.0
    %1004 = vmatpush1.msra.mxu0 0.0
    %1005 = vmatprep.subr.mxu0 0.0
    %1006 = vmatpush1.msra.mxu0 0.0
    %1007 = vmatprep.subr.mxu0 0.0
    %1008 = vmatpush1.msra.mxu0 0.0
    %1009 = vmatprep.subr.mxu0 0.0
    %1010 = vmatpush1.msra.mxu0 0.0
    %1011 = vmatprep.subr.mxu0 0.0
    %1012 = vmatpush1.msra.mxu0 0.0
    %1013 = vmatprep.subr.mxu0 0.0
    %1014 = vmatpush1.msra.mxu0 0.0
    %1015 = vmatprep.subr.mxu0 0.0
    %1016 = vmatpush1.msra.mxu0 0.0
    %1017 = vmatprep.subr.mxu0 0.0
    %1018 = vmatpush1.msra.mxu0 0.0
    %1019 = vmatprep.subr.mxu0 0.0
    %1020 = vmatpush1.msra.mxu0 0.0
    %1021 = vmatprep.subr.mxu0 0.0
    %1022 = vmatpush1.msra.mxu0 0.0
    %1023 = vmatprep.subr.mxu0 0.0
    %1024 = vmatpush1.msra.mxu0 0.0
    %1025 = vmatprep.subr.mxu0 0.0
    %1026 = vmatpush1.msra.mxu0 0.0
    %1027 = vmatprep.subr.mxu0 0.0
    %1028 = vmatpush1.msra.mxu0 0.0
    %1029 = vmatprep.subr.mxu0 0.0
    %1030 = vmatpush1.msra.mxu0 0.0
    %1031 = vmatprep.subr.mxu0 0.0
    %1032 = vmatpush1.msra.mxu0 0.0
    %1033 = vmatprep.subr.mxu0 0.0
    %1034 = vmatpush1.msra.mxu0 0.0
    %1035 = vmatprep.subr.mxu0 0.0
    %1036 = vmatpush1.msra.mxu0 0.0
    %1037 = vmatprep.subr.mxu0 0.0
    %1038 = vmatpush1.msra.mxu0 0.0
    %1039 = vmatprep.subr.mxu0 0.0
    %1040 = vmatpush1.msra.mxu0 0.0
    %1041 = vmatprep.subr.mxu0 0.0
    %1042 = vmatpush1.msra.mxu0 0.0
    %1043 = vmatprep.subr.mxu0 0.0
    %1044 = vmatpush1.msra.mxu0 0.0
    %1045 = vmatprep.subr.mxu0 0.0
    %1046 = vmatpush1.msra.mxu0 0.0
    %1047 = vmatprep.subr.mxu0 0.0
    %1048 = vmatpush1.msra.mxu0 0.0
    %1049 = vmatprep.subr.mxu0 0.0
    %1050 = vmatpush1.msra.mxu0 0.0
    %1051 = vmatprep.subr.mxu0 0.0
    %1052 = vmatpush1.msra.mxu0 0.0
    %1053 = vmatprep.subr.mxu0 0.0
    %1054 = vmatpush1.msra.mxu0 0.0
    %1055 = vmatprep.subr.mxu0 0.0
    %1056 = vmatpush1.msra.mxu0 0.0
    %1057 = vmatprep.mubr.f32.mxu0 0.0
    %1058 = vmatmul.mubr.f32.gmra.mrb[0].mxu0 %v269
    %v1059 = vpop.f32.mrb[0].mxu0
    %v1060 = vadd.f32 0.0, %v1059
    %v1061 = vpop.f32.mrb[0].mxu0
    %1062 = vmatprep.mubr.f32.mxu0 0.0
    %1063 = vmatmul.mubr.f32.gmra.mrb[0].mxu0 %v272
    %v1064 = vpop.f32.mrb[0].mxu0
    %v1065 = vadd.f32 0.0, %v1064
    %v1066 = vpop.f32.mrb[0].mxu0
    %1067 = vmatprep.mubr.f32.mxu0 0.0
    %1068 = vmatmul.mubr.f32.gmra.mrb[0].mxu0 %v275
    %v1069 = vpop.f32.mrb[0].mxu0
    %v1070 = vadd.f32 0.0, %v1069
    %v1071 = vpop.f32.mrb[0].mxu0
    %1072 = vmatprep.mubr.f32.mxu0 0.0
    %1073 = vmatmul.mubr.f32.gmra.mrb[0].mxu0 %v278
    %v1074 = vpop.f32.mrb[0].mxu0
    %v1075 = vadd.f32 0.0, %v1074
    %v1076 = vpop.f32.mrb[0].mxu0
    %1077 = vmatprep.mubr.f32.mxu0 0.0
    %1078 = vmatmul.mubr.f32.gmra.mrb[0].mxu0 %v281
    %v1079 = vpop.f32.mrb[0].mxu0
    %v1080 = vadd.f32 0.0, %v1079
    %v1081 = vpop.f32.mrb[0].mxu0
    %1082 = vmatprep.mubr.f32.mxu0 0.0
    %1083 = vmatmul.mubr.f32.gmra.mrb[0].mxu0 %v284
    %v1084 = vpop.f32.mrb[0].mxu0
    %v1085 = vadd.f32 0.0, %v1084
    %v1086 = vpop.f32.mrb[0].mxu0
    %1087 = vmatprep.mubr.f32.mxu0 0.0
    %1088 = vmatmul.mubr.f32.gmra.mrb[0].mxu0 %v287
    %v1089 = vpop.f32.mrb[0].mxu0
    %v1090 = vadd.f32 0.0, %v1089
    %v1091 = vpop.f32.mrb[0].mxu0
    %1092 = vmatprep.mubr.f32.mxu0 0.0
    %1093 = vmatmul.mubr.f32.gmra.mrb[0].mxu0 %v290
    %v1094 = vpop.f32.mrb[0].mxu0
    %v1095 = vadd.f32 0.0, %v1094
    %v1096 = vpop.f32.mrb[0].mxu0
    %1097 = vdwg.mxu0
    %s1098 = scalar_lea.vmem [#allocation6], 384
    %1099 = vst.msk [vmem:[%s1098] sm:$0xff] %vm241, %v1060
    %1100 = vst.msk [vmem:[%s1098 + $0x8] sm:$0xff] %vm241, %v1065
    %1101 = vst.msk [vmem:[%s1098 + $0x10] sm:$0xff] %vm241, %v1070
    %1102 = vst.msk [vmem:[%s1098 + $0x18] sm:$0xff] %vm241, %v1075
    %1103 = vst.msk [vmem:[%s1098 + $0x20] sm:$0xff] %vm241, %v1080
    %1104 = vst.msk [vmem:[%s1098 + $0x28] sm:$0xff] %vm241, %v1085
    %1105 = vst.msk [vmem:[%s1098 + $0x30] sm:$0xff] %vm241, %v1090
    %1106 = vst.msk [vmem:[%s1098 + $0x38] sm:$0xff] %vm241, %v1095
    %s1107 = scalar_lea.vmem [#allocation2], 112
    %v1108 = vld [vmem:[%s1107] sm:$0xff]
    %v1109 = vld [vmem:[%s1107 + $0x8] sm:$0xff]
    %1110 = vmatprep.subr.mxu0 0.0
    %1111 = vmatpush1.msra.mxu0 %v1108
    %1112 = vmatprep.subr.mxu0 0.0
    %1113 = vmatpush1.msra.mxu0 %v1109
    %1114 = vmatprep.subr.mxu0 0.0
    %1115 = vmatpush1.msra.mxu0 0.0
    %1116 = vmatprep.subr.mxu0 0.0
    %1117 = vmatpush1.msra.mxu0 0.0
    %1118 = vmatprep.subr.mxu0 0.0
    %1119 = vmatpush1.msra.mxu0 0.0
    %1120 = vmatprep.subr.mxu0 0.0
    %1121 = vmatpush1.msra.mxu0 0.0
    %1122 = vmatprep.subr.mxu0 0.0
    %1123 = vmatpush1.msra.mxu0 0.0
    %1124 = vmatprep.subr.mxu0 0.0
    %1125 = vmatpush1.msra.mxu0 0.0
    %1126 = vmatprep.subr.mxu0 0.0
    %1127 = vmatpush1.msra.mxu0 0.0
    %1128 = vmatprep.subr.mxu0 0.0
    %1129 = vmatpush1.msra.mxu0 0.0
    %1130 = vmatprep.subr.mxu0 0.0
    %1131 = vmatpush1.msra.mxu0 0.0
    %1132 = vmatprep.subr.mxu0 0.0
    %1133 = vmatpush1.msra.mxu0 0.0
    %1134 = vmatprep.subr.mxu0 0.0
    %1135 = vmatpush1.msra.mxu0 0.0
    %1136 = vmatprep.subr.mxu0 0.0
    %1137 = vmatpush1.msra.mxu0 0.0
    %1138 = vmatprep.subr.mxu0 0.0
    %1139 = vmatpush1.msra.mxu0 0.0
    %1140 = vmatprep.subr.mxu0 0.0
    %1141 = vmatpush1.msra.mxu0 0.0
    %1142 = vmatprep.subr.mxu0 0.0
    %1143 = vmatpush1.msra.mxu0 0.0
    %1144 = vmatprep.subr.mxu0 0.0
    %1145 = vmatpush1.msra.mxu0 0.0
    %1146 = vmatprep.subr.mxu0 0.0
    %1147 = vmatpush1.msra.mxu0 0.0
    %1148 = vmatprep.subr.mxu0 0.0
    %1149 = vmatpush1.msra.mxu0 0.0
    %1150 = vmatprep.subr.mxu0 0.0
    %1151 = vmatpush1.msra.mxu0 0.0
    %1152 = vmatprep.subr.mxu0 0.0
    %1153 = vmatpush1.msra.mxu0 0.0
    %1154 = vmatprep.subr.mxu0 0.0
    %1155 = vmatpush1.msra.mxu0 0.0
    %1156 = vmatprep.subr.mxu0 0.0
    %1157 = vmatpush1.msra.mxu0 0.0
    %1158 = vmatprep.subr.mxu0 0.0
    %1159 = vmatpush1.msra.mxu0 0.0
    %1160 = vmatprep.subr.mxu0 0.0
    %1161 = vmatpush1.msra.mxu0 0.0
    %1162 = vmatprep.subr.mxu0 0.0
    %1163 = vmatpush1.msra.mxu0 0.0
    %1164 = vmatprep.subr.mxu0 0.0
    %1165 = vmatpush1.msra.mxu0 0.0
    %1166 = vmatprep.subr.mxu0 0.0
    %1167 = vmatpush1.msra.mxu0 0.0
    %1168 = vmatprep.subr.mxu0 0.0
    %1169 = vmatpush1.msra.mxu0 0.0
    %1170 = vmatprep.subr.mxu0 0.0
    %1171 = vmatpush1.msra.mxu0 0.0
    %1172 = vmatprep.subr.mxu0 0.0
    %1173 = vmatpush1.msra.mxu0 0.0
    %1174 = vmatprep.mubr.f32.mxu0 0.0
    %1175 = vmatmul.mubr.f32.gmra.mrb[0].mxu0 %v269
    %v1176 = vpop.f32.mrb[0].mxu0
    %v1177 = vadd.f32 0.0, %v1176
    %v1178 = vpop.f32.mrb[0].mxu0
    %1179 = vmatprep.mubr.f32.mxu0 0.0
    %1180 = vmatmul.mubr.f32.gmra.mrb[0].mxu0 %v272
    %v1181 = vpop.f32.mrb[0].mxu0
    %v1182 = vadd.f32 0.0, %v1181
    %v1183 = vpop.f32.mrb[0].mxu0
    %1184 = vmatprep.mubr.f32.mxu0 0.0
    %1185 = vmatmul.mubr.f32.gmra.mrb[0].mxu0 %v275
    %v1186 = vpop.f32.mrb[0].mxu0
    %v1187 = vadd.f32 0.0, %v1186
    %v1188 = vpop.f32.mrb[0].mxu0
    %1189 = vmatprep.mubr.f32.mxu0 0.0
    %1190 = vmatmul.mubr.f32.gmra.mrb[0].mxu0 %v278
    %v1191 = vpop.f32.mrb[0].mxu0
    %v1192 = vadd.f32 0.0, %v1191
    %v1193 = vpop.f32.mrb[0].mxu0
    %1194 = vmatprep.mubr.f32.mxu0 0.0
    %1195 = vmatmul.mubr.f32.gmra.mrb[0].mxu0 %v281
    %v1196 = vpop.f32.mrb[0].mxu0
    %v1197 = vadd.f32 0.0, %v1196
    %v1198 = vpop.f32.mrb[0].mxu0
    %1199 = vmatprep.mubr.f32.mxu0 0.0
    %1200 = vmatmul.mubr.f32.gmra.mrb[0].mxu0 %v284
    %v1201 = vpop.f32.mrb[0].mxu0
    %v1202 = vadd.f32 0.0, %v1201
    %v1203 = vpop.f32.mrb[0].mxu0
    %1204 = vmatprep.mubr.f32.mxu0 0.0
    %1205 = vmatmul.mubr.f32.gmra.mrb[0].mxu0 %v287
    %v1206 = vpop.f32.mrb[0].mxu0
    %v1207 = vadd.f32 0.0, %v1206
    %v1208 = vpop.f32.mrb[0].mxu0
    %1209 = vmatprep.mubr.f32.mxu0 0.0
    %1210 = vmatmul.mubr.f32.gmra.mrb[0].mxu0 %v290
    %v1211 = vpop.f32.mrb[0].mxu0
    %v1212 = vadd.f32 0.0, %v1211
    %v1213 = vpop.f32.mrb[0].mxu0
    %1214 = vdwg.mxu0
    %s1215 = scalar_lea.vmem [#allocation6], 448
    %1216 = vst.msk [vmem:[%s1215] sm:$0xff] %vm241, %v1177
    %1217 = vst.msk [vmem:[%s1215 + $0x8] sm:$0xff] %vm241, %v1182
    %1218 = vst.msk [vmem:[%s1215 + $0x10] sm:$0xff] %vm241, %v1187
    %1219 = vst.msk [vmem:[%s1215 + $0x18] sm:$0xff] %vm241, %v1192
    %1220 = vst.msk [vmem:[%s1215 + $0x20] sm:$0xff] %vm241, %v1197
    %1221 = vst.msk [vmem:[%s1215 + $0x28] sm:$0xff] %vm241, %v1202
    %1222 = vst.msk [vmem:[%s1215 + $0x30] sm:$0xff] %vm241, %v1207
    %1223 = vst.msk [vmem:[%s1215 + $0x38] sm:$0xff] %vm241, %v1212
    // Predicated region
    $region18: #{tpu_custom_call.1} parent=1 // pred_check
      _
    $region19: #{tpu_custom_call.1} parent=1 // pred_check_branch
      %1225 = sbr.rel (0) target = $region21
    $region20: #{tpu_custom_call.1} parent=1 // pred_region
      %s1227 = ssub.s32 8192, 8192
      %1228 = vsyncadd [#allocation5], %s1227
      %s1229 = sshll.u32 [#allocation6], 4
      %s1230 = int_to_ptr.vmem [resolvable:$true] %s1229
      %1235 = dma.vmem_to_hbm [thread:$0]  %s1230, 8192, %s3, [#allocation5], 128, 128, 8
    $region21: #{tpu_custom_call.1} parent=1 // pred_fallthru
      _
    // Predicated region
    $region22: #{tpu_custom_call.1} parent=1 // pred_check
      _
    $region23: #{tpu_custom_call.1} parent=1 // pred_check_branch
      %1237 = sbr.rel (0) target = $region25
    $region24: #{tpu_custom_call.1} parent=1 // pred_region
      %1238 = dma.done [#allocation5], 8192
    $region25: #{tpu_custom_call.1} parent=1 // pred_fallthru
      _
    %1239 = vsyncpa [#allocation4], 1
    %1240 = vsyncpa [#allocation5], 1

</llo_original>
